<compile_context>
chip_gen: v5e
topology: v5e:2x2
jax: 0.10.0
libtpu: 0.0.40
codegen_flags: <defaults>
</compile_context>

<pallas_src>
import functools

import jax
import jax.numpy as jnp
from jax.experimental import pallas as pl
from jax.experimental.pallas import tpu as pltpu


def _ghmc_kernel(pred_ref, targ_ref, cnt_ref, sum_ref, *,
                 bins, tile_rows, tiles_per_split, total):
    """Per-tile GHMC histogram + BCE-sum accumulation.

    pred_ref: (tile_rows, 128) f32 logits                     [VMEM]
    targ_ref: (tile_rows, 128) f32 targets in [0, 1]          [VMEM]
    cnt_ref:  (bins_pad, 128)  f32 per-bin per-lane counts    [VMEM, resident]
    sum_ref:  (bins_pad, 128)  f32 per-bin per-lane BCE sums  [VMEM, resident]
    """
    c = pl.program_id(0)          # parallel split (megacore on v7x)
    t = pl.program_id(1)          # accumulation axis

    @pl.when(t == 0)
    def _init():
        cnt_ref[...] = jnp.zeros_like(cnt_ref)
        sum_ref[...] = jnp.zeros_like(sum_ref)

    x = pred_ref[...]
    tgt = targ_ref[...]

    # sigmoid + clamped logs (matches torch.nn.BCELoss's -100 clamp)
    p = jax.nn.sigmoid(x)
    log_p = jnp.maximum(jnp.log(p), -100.0)
    log_1mp = jnp.maximum(jnp.log(1.0 - p), -100.0)
    bce = -(tgt * log_p + (1.0 - tgt) * log_1mp)
    g = jnp.abs(p - tgt)                      # gradient-norm proxy

    # validity mask for padded / out-of-bounds tail (flat index >= total).
    # The logical tile index is used (NOT the clamped DMA index), so tiles
    # that only exist to round out the grid contribute exactly zero.
    row = jax.lax.broadcasted_iota(jnp.int32, (tile_rows, 128), 0)
    lane = jax.lax.broadcasted_iota(jnp.int32, (tile_rows, 128), 1)
    tile_idx = c * tiles_per_split + t
    flat = (tile_idx * tile_rows + row) * 128 + lane
    valid = flat < total

    # one bin index per element; g == 1.0 gives index `bins` (excluded, like
    # the torch `g < edges[i+1]` test); invalid elements are forced to `bins`.
    bin_idx = (g * bins).astype(jnp.int32)
    bin_idx = jnp.where(valid, bin_idx, bins)

    # statically unrolled histogram: per bin 1 compare + 2 selects/converts
    # + 2 sublane reduce chains; scalars are never formed in the kernel.
    for i in range(bins):
        m = bin_idx == i
        cnt_i = jnp.sum(m.astype(jnp.float32), axis=0, keepdims=True)       # (1,128)
        sum_i = jnp.sum(jnp.where(m, bce, 0.0), axis=0, keepdims=True)      # (1,128)
        cnt_ref[i:i + 1, :] += cnt_i
        sum_ref[i:i + 1, :] += sum_i


def ghmc_loss(pred, target, bins=10, tile_rows=2048, num_splits=2):
    """JAX wrapper reproducing GHMC.forward(pred, target)."""
    target = jnp.squeeze(target, axis=-1)
    pred_flat = pred.reshape(-1).astype(jnp.float32)
    targ_flat = target.reshape(-1).astype(jnp.float32)
    n = pred_flat.shape[0]

    # pad only to a whole number of (8, 128) vregs; when n is already aligned
    # the reshape below is a free bitcast (no extra HBM pass).
    rows = ((pl.cdiv(n, 128) + 7) // 8) * 8
    n_pad = rows * 128
    if n_pad != n:
        pred_flat = jnp.pad(pred_flat, (0, n_pad - n))
        targ_flat = jnp.pad(targ_flat, (0, n_pad - n))
    pred2 = pred_flat.reshape(rows, 128)
    targ2 = targ_flat.reshape(rows, 128)

    # tile / grid selection (shrink for tiny inputs; sublanes multiple of 8)
    tile_rows = max(8, min(int(tile_rows), rows))
    tile_rows = ((tile_rows + 7) // 8) * 8
    num_blocks = pl.cdiv(rows, tile_rows)
    num_splits = max(1, min(int(num_splits), num_blocks))
    tiles_per_split = pl.cdiv(num_blocks, num_splits)
    last_block = num_blocks - 1

    bins_pad = ((bins + 7) // 8) * 8

    kernel = functools.partial(
        _ghmc_kernel, bins=bins, tile_rows=tile_rows,
        tiles_per_split=tiles_per_split, total=n)

    acc_shape = jax.ShapeDtypeStruct((num_splits, bins_pad, 128), jnp.float32)

    def data_map(c, t):
        # clamp the DMA to the last real block; overrun tiles are fully
        # masked in-kernel via the flat-index validity test.
        return (jnp.minimum(c * tiles_per_split + t, last_block), 0)

    data_spec = pl.BlockSpec((tile_rows, 128), data_map)
    acc_spec = pl.BlockSpec((None, bins_pad, 128), lambda c, t: (c, 0, 0))

    cost = pl.CostEstimate(
        flops=int(n_pad * (5 * bins + 30)),
        transcendentals=int(3 * n_pad),
        bytes_accessed=int(8 * n_pad + 2 * num_splits * bins_pad * 128 * 4),
    )

    cnt, bce_sum = pl.pallas_call(
        kernel,
        out_shape=(acc_shape, acc_shape),
        grid_spec=pltpu.PrefetchScalarGridSpec(
            num_scalar_prefetch=0,
            grid=(num_splits, tiles_per_split),
            in_specs=[data_spec, data_spec],
            out_specs=(acc_spec, acc_spec),
        ),
        compiler_params=pltpu.CompilerParams(
            dimension_semantics=("parallel", "arbitrary")),
        cost_estimate=cost,
    )(pred2, targ2)

    # Tiny O(bins) epilogue: combine per-split / per-lane partials.
    cnt_b = jnp.sum(cnt[:, :bins, :], axis=(0, 2))       # (bins,)
    sum_b = jnp.sum(bce_sum[:, :bins, :], axis=(0, 2))   # (bins,)
    has = cnt_b > 0.0
    n_valid = jnp.sum(has.astype(jnp.float32))
    per_bin = jnp.where(has, sum_b / jnp.maximum(cnt_b, 1.0), 0.0)
    return jnp.sum(per_bin) / jnp.maximum(n_valid, 1.0)


def _ghmc_reference(pred, target, bins=10):
    """Pure-jnp reference mirroring the PyTorch module (for verification)."""
    t = jnp.squeeze(target, axis=-1).reshape(-1).astype(jnp.float32)
    p = jax.nn.sigmoid(pred.reshape(-1).astype(jnp.float32))
    g = jnp.abs(p - t)
    tot = float(p.shape[0])
    edges = jnp.arange(bins + 1, dtype=jnp.float32) / bins
    weights = jnp.zeros_like(p)
    n_valid = jnp.float32(0.0)
    for i in range(bins):
        inds = (g >= edges[i]) & (g < edges[i + 1])
        num = jnp.sum(inds.astype(jnp.float32))
        has = num > 0
        weights = weights + jnp.where(inds, tot / jnp.where(has, num, 1.0), 0.0)
        n_valid = n_valid + jnp.where(has, 1.0, 0.0)
    weights = weights / jnp.maximum(n_valid, 1.0)
    log_p = jnp.maximum(jnp.log(p), -100.0)
    log_1mp = jnp.maximum(jnp.log(1.0 - p), -100.0)
    bce = -(t * log_p + (1.0 - t) * log_1mp)
    return jnp.sum(weights * bce) / tot


if __name__ == "__main__":
    key = jax.random.PRNGKey(0)
    k1, k2 = jax.random.split(key)

    # Small, non-128-aligned N: exercises the pad-to-vreg path, the clamped
    # overrun tiles, multi-step accumulation and the parallel split.
    N = 20000
    pred = jax.random.normal(k1, (N,), dtype=jnp.float32) * 3.0
    target = (jax.random.uniform(k2, (N, 1)) > 0.5).astype(jnp.float32)

    ref = jax.block_until_ready(_ghmc_reference(pred, target, bins=10))

    # default (large-tile) config
    loss_a = jax.block_until_ready(ghmc_loss(pred, target, bins=10))
    # small-tile config: multi-tile accumulation + clamped trailing tile
    loss_b = jax.block_until_ready(
        ghmc_loss(pred, target, bins=10, tile_rows=32, num_splits=2))

    tol = 2e-3 * max(1.0, abs(float(ref)))
    assert abs(float(loss_a) - float(ref)) < tol, (float(loss_a), float(ref))
    assert abs(float(loss_b) - float(ref)) < tol, (float(loss_b), float(ref))

    print("KERNEL_OK")
</pallas_src>

<mosaic_0001>
module attributes {stable_mosaic.version = 11 : i64} {
  func.func @_ghmc_kernel(%arg0: i32, %arg1: i32, %arg2: memref<160x128xf32, #tpu.memory_space<vmem>>, %arg3: memref<160x128xf32, #tpu.memory_space<vmem>>, %arg4: memref<1x16x128xf32, #tpu.memory_space<vmem>>, %arg5: memref<1x16x128xf32, #tpu.memory_space<vmem>>) attributes {dimension_semantics = [#tpu.dimension_semantics<parallel>, #tpu.dimension_semantics<arbitrary>], iteration_bounds = array<i64: 1, 1>, scalar_prefetch = 0 : i64, scratch_operands = 0 : i64, tpu.core_type = #tpu.core_type<tc>, window_params = [{transform_indices = @transform_0, window_bounds = array<i64: 160, 128>}, {transform_indices = @transform_1, window_bounds = array<i64: 160, 128>}, {transform_indices = @transform_2, window_bounds = array<i64: 1, 16, 128>}, {transform_indices = @transform_3, window_bounds = array<i64: 1, 16, 128>}]} {
    %c0_i32 = arith.constant 0 : i32
    %0 = arith.cmpi eq, %arg1, %c0_i32 : i32
    %1 = arith.extui %0 : i1 to i32
    %c0_i32_0 = arith.constant 0 : i32
    %2 = arith.cmpi ne, %1, %c0_i32_0 : i32
    scf.if %2 {
      %cst_153 = arith.constant 0.000000e+00 : f32
      %264 = vector.broadcast %cst_153 : f32 to vector<16x128xf32>
      %c0_154 = arith.constant 0 : index
      %c0_155 = arith.constant 0 : index
      %c0_156 = arith.constant 0 : index
      %265 = vector.load %arg4[%c0_154, %c0_155, %c0_156] : memref<1x16x128xf32, #tpu.memory_space<vmem>>, vector<1x16x128xf32>
      %266 = vector.shape_cast %265 : vector<1x16x128xf32> to vector<16x128xf32>
      %267 = vector.shape_cast %264 : vector<16x128xf32> to vector<1x16x128xf32>
      tpu.vector_store %arg4[%c0_154, %c0_155, %c0_156], %267 {strides = array<i32>} : memref<1x16x128xf32, #tpu.memory_space<vmem>>, vector<1x16x128xf32>,
      %cst_157 = arith.constant 0.000000e+00 : f32
      %268 = vector.broadcast %cst_157 : f32 to vector<16x128xf32>
      %c0_158 = arith.constant 0 : index
      %c0_159 = arith.constant 0 : index
      %c0_160 = arith.constant 0 : index
      %269 = vector.load %arg5[%c0_158, %c0_159, %c0_160] : memref<1x16x128xf32, #tpu.memory_space<vmem>>, vector<1x16x128xf32>
      %270 = vector.shape_cast %269 : vector<1x16x128xf32> to vector<16x128xf32>
      %271 = vector.shape_cast %268 : vector<16x128xf32> to vector<1x16x128xf32>
      tpu.vector_store %arg5[%c0_158, %c0_159, %c0_160], %271 {strides = array<i32>} : memref<1x16x128xf32, #tpu.memory_space<vmem>>, vector<1x16x128xf32>,
    } else {
    }
    %c0 = arith.constant 0 : index
    %c0_1 = arith.constant 0 : index
    %3 = vector.load %arg2[%c0, %c0_1] : memref<160x128xf32, #tpu.memory_space<vmem>>, vector<160x128xf32>
    %c0_2 = arith.constant 0 : index
    %c0_3 = arith.constant 0 : index
    %4 = vector.load %arg3[%c0_2, %c0_3] : memref<160x128xf32, #tpu.memory_space<vmem>>, vector<160x128xf32>
    %5 = arith.negf %3 : vector<160x128xf32>
    %6 = math.exp %5 : vector<160x128xf32>
    %cst = arith.constant 1.000000e+00 : f32
    %7 = vector.broadcast %cst : f32 to vector<160x128xf32>
    %8 = arith.addf %7, %6 : vector<160x128xf32>
    %9 = arith.divf %7, %8 : vector<160x128xf32>
    %10 = math.log %9 : vector<160x128xf32>
    %cst_4 = arith.constant -1.000000e+02 : f32
    %11 = vector.broadcast %cst_4 : f32 to vector<160x128xf32>
    %12 = arith.maximumf %10, %11 : vector<160x128xf32>
    %cst_5 = arith.constant 1.000000e+00 : f32
    %13 = vector.broadcast %cst_5 : f32 to vector<160x128xf32>
    %14 = arith.subf %13, %9 : vector<160x128xf32>
    %15 = math.log %14 : vector<160x128xf32>
    %cst_6 = arith.constant -1.000000e+02 : f32
    %16 = vector.broadcast %cst_6 : f32 to vector<160x128xf32>
    %17 = arith.maximumf %15, %16 : vector<160x128xf32>
    %18 = arith.mulf %4, %12 : vector<160x128xf32>
    %cst_7 = arith.constant 1.000000e+00 : f32
    %19 = vector.broadcast %cst_7 : f32 to vector<160x128xf32>
    %20 = arith.subf %19, %4 : vector<160x128xf32>
    %21 = arith.mulf %20, %17 : vector<160x128xf32>
    %22 = arith.addf %18, %21 : vector<160x128xf32>
    %cst_8 = arith.constant 0.000000e+00 : f32
    %23 = vector.broadcast %cst_8 : f32 to vector<160x128xf32>
    %24 = arith.subf %23, %22 : vector<160x128xf32>
    %25 = arith.subf %9, %4 : vector<160x128xf32>
    %26 = math.absf %25 : vector<160x128xf32>
    %27 = tpu.iota {dimensions = array<i32: 0>} : vector<160x128xi32>
    %28 = tpu.iota {dimensions = array<i32: 1>} : vector<160x128xi32>
    %c1_i32 = arith.constant 1 : i32
    %29 = arith.muli %arg0, %c1_i32 : i32
    %30 = arith.addi %29, %arg1 : i32
    %c160_i32 = arith.constant 160 : i32
    %31 = arith.muli %30, %c160_i32 : i32
    %32 = vector.broadcast %31 : i32 to vector<160x128xi32>
    %33 = arith.addi %32, %27 : vector<160x128xi32>
    %c128_i32 = arith.constant 128 : i32
    %34 = vector.broadcast %c128_i32 : i32 to vector<160x128xi32>
    %35 = arith.muli %33, %34 : vector<160x128xi32>
    %36 = arith.addi %35, %28 : vector<160x128xi32>
    %c20000_i32 = arith.constant 20000 : i32
    %37 = vector.broadcast %c20000_i32 : i32 to vector<160x128xi32>
    %38 = arith.cmpi slt, %36, %37 : vector<160x128xi32>
    %cst_9 = arith.constant 1.000000e+01 : f32
    %39 = vector.broadcast %cst_9 : f32 to vector<160x128xf32>
    %40 = arith.mulf %26, %39 : vector<160x128xf32>
    %41 = arith.fptosi %40 : vector<160x128xf32> to vector<160x128xi32>
    %c10_i32 = arith.constant 10 : i32
    %42 = vector.broadcast %c10_i32 : i32 to vector<160x128xi32>
    %43 = arith.select %38, %41, %42 : vector<160x128xi1>, vector<160x128xi32>
    %c0_i32_10 = arith.constant 0 : i32
    %44 = vector.broadcast %c0_i32_10 : i32 to vector<160x128xi32>
    %45 = arith.cmpi eq, %43, %44 : vector<160x128xi32>
    %46 = arith.extui %45 : vector<160x128xi1> to vector<160x128xi32>
    %47 = arith.sitofp %46 : vector<160x128xi32> to vector<160x128xf32>
    %cst_11 = arith.constant dense<0.000000e+00> : vector<128xf32>
    %48 = vector.multi_reduction <add>, %47, %cst_11 [0] : vector<160x128xf32> to vector<128xf32>
    %49 = vector.shape_cast %48 : vector<128xf32> to vector<1x128xf32>
    %cst_12 = arith.constant 0.000000e+00 : f32
    %50 = vector.broadcast %cst_12 : f32 to vector<160x128xf32>
    %51 = arith.select %45, %24, %50 : vector<160x128xi1>, vector<160x128xf32>
    %cst_13 = arith.constant dense<0.000000e+00> : vector<128xf32>
    %52 = vector.multi_reduction <add>, %51, %cst_13 [0] : vector<160x128xf32> to vector<128xf32>
    %53 = vector.shape_cast %52 : vector<128xf32> to vector<1x128xf32>
    %c0_14 = arith.constant 0 : index
    %c0_15 = arith.constant 0 : index
    %c0_16 = arith.constant 0 : index
    %54 = vector.load %arg4[%c0_14, %c0_15, %c0_16] : memref<1x16x128xf32, #tpu.memory_space<vmem>>, vector<1x1x128xf32>
    %55 = vector.shape_cast %54 : vector<1x1x128xf32> to vector<1x128xf32>
    %56 = arith.addf %55, %49 : vector<1x128xf32>
    %c0_17 = arith.constant 0 : index
    %c0_18 = arith.constant 0 : index
    %c0_19 = arith.constant 0 : index
    %57 = vector.load %arg4[%c0_17, %c0_18, %c0_19] : memref<1x16x128xf32, #tpu.memory_space<vmem>>, vector<1x1x128xf32>
    %58 = vector.shape_cast %57 : vector<1x1x128xf32> to vector<1x128xf32>
    %59 = vector.shape_cast %56 : vector<1x128xf32> to vector<1x1x128xf32>
    tpu.vector_store %arg4[%c0_17, %c0_18, %c0_19], %59 {strides = array<i32>} : memref<1x16x128xf32, #tpu.memory_space<vmem>>, vector<1x1x128xf32>,
    %c0_20 = arith.constant 0 : index
    %c0_21 = arith.constant 0 : index
    %c0_22 = arith.constant 0 : index
    %60 = vector.load %arg5[%c0_20, %c0_21, %c0_22] : memref<1x16x128xf32, #tpu.memory_space<vmem>>, vector<1x1x128xf32>
    %61 = vector.shape_cast %60 : vector<1x1x128xf32> to vector<1x128xf32>
    %62 = arith.addf %61, %53 : vector<1x128xf32>
    %c0_23 = arith.constant 0 : index
    %c0_24 = arith.constant 0 : index
    %c0_25 = arith.constant 0 : index
    %63 = vector.load %arg5[%c0_23, %c0_24, %c0_25] : memref<1x16x128xf32, #tpu.memory_space<vmem>>, vector<1x1x128xf32>
    %64 = vector.shape_cast %63 : vector<1x1x128xf32> to vector<1x128xf32>
    %65 = vector.shape_cast %62 : vector<1x128xf32> to vector<1x1x128xf32>
    tpu.vector_store %arg5[%c0_23, %c0_24, %c0_25], %65 {strides = array<i32>} : memref<1x16x128xf32, #tpu.memory_space<vmem>>, vector<1x1x128xf32>,
    %c1_i32_26 = arith.constant 1 : i32
    %66 = vector.broadcast %c1_i32_26 : i32 to vector<160x128xi32>
    %67 = arith.cmpi eq, %43, %66 : vector<160x128xi32>
    %68 = arith.extui %67 : vector<160x128xi1> to vector<160x128xi32>
    %69 = arith.sitofp %68 : vector<160x128xi32> to vector<160x128xf32>
    %cst_27 = arith.constant dense<0.000000e+00> : vector<128xf32>
    %70 = vector.multi_reduction <add>, %69, %cst_27 [0] : vector<160x128xf32> to vector<128xf32>
    %71 = vector.shape_cast %70 : vector<128xf32> to vector<1x128xf32>
    %cst_28 = arith.constant 0.000000e+00 : f32
    %72 = vector.broadcast %cst_28 : f32 to vector<160x128xf32>
    %73 = arith.select %67, %24, %72 : vector<160x128xi1>, vector<160x128xf32>
    %cst_29 = arith.constant dense<0.000000e+00> : vector<128xf32>
    %74 = vector.multi_reduction <add>, %73, %cst_29 [0] : vector<160x128xf32> to vector<128xf32>
    %75 = vector.shape_cast %74 : vector<128xf32> to vector<1x128xf32>
    %c0_30 = arith.constant 0 : index
    %c1 = arith.constant 1 : index
    %c0_31 = arith.constant 0 : index
    %76 = vector.load %arg4[%c0_30, %c1, %c0_31] : memref<1x16x128xf32, #tpu.memory_space<vmem>>, vector<1x1x128xf32>
    %77 = vector.shape_cast %76 : vector<1x1x128xf32> to vector<1x128xf32>
    %78 = arith.addf %77, %71 : vector<1x128xf32>
    %c0_32 = arith.constant 0 : index
    %c1_33 = arith.constant 1 : index
    %c0_34 = arith.constant 0 : index
    %79 = vector.load %arg4[%c0_32, %c1_33, %c0_34] : memref<1x16x128xf32, #tpu.memory_space<vmem>>, vector<1x1x128xf32>
    %80 = vector.shape_cast %79 : vector<1x1x128xf32> to vector<1x128xf32>
    %81 = vector.shape_cast %78 : vector<1x128xf32> to vector<1x1x128xf32>
    tpu.vector_store %arg4[%c0_32, %c1_33, %c0_34], %81 {strides = array<i32>} : memref<1x16x128xf32, #tpu.memory_space<vmem>>, vector<1x1x128xf32>,
    %c0_35 = arith.constant 0 : index
    %c1_36 = arith.constant 1 : index
    %c0_37 = arith.constant 0 : index
    %82 = vector.load %arg5[%c0_35, %c1_36, %c0_37] : memref<1x16x128xf32, #tpu.memory_space<vmem>>, vector<1x1x128xf32>
    %83 = vector.shape_cast %82 : vector<1x1x128xf32> to vector<1x128xf32>
    %84 = arith.addf %83, %75 : vector<1x128xf32>
    %c0_38 = arith.constant 0 : index
    %c1_39 = arith.constant 1 : index
    %c0_40 = arith.constant 0 : index
    %85 = vector.load %arg5[%c0_38, %c1_39, %c0_40] : memref<1x16x128xf32, #tpu.memory_space<vmem>>, vector<1x1x128xf32>
    %86 = vector.shape_cast %85 : vector<1x1x128xf32> to vector<1x128xf32>
    %87 = vector.shape_cast %84 : vector<1x128xf32> to vector<1x1x128xf32>
    tpu.vector_store %arg5[%c0_38, %c1_39, %c0_40], %87 {strides = array<i32>} : memref<1x16x128xf32, #tpu.memory_space<vmem>>, vector<1x1x128xf32>,
    %c2_i32 = arith.constant 2 : i32
    %88 = vector.broadcast %c2_i32 : i32 to vector<160x128xi32>
    %89 = arith.cmpi eq, %43, %88 : vector<160x128xi32>
    %90 = arith.extui %89 : vector<160x128xi1> to vector<160x128xi32>
    %91 = arith.sitofp %90 : vector<160x128xi32> to vector<160x128xf32>
    %cst_41 = arith.constant dense<0.000000e+00> : vector<128xf32>
    %92 = vector.multi_reduction <add>, %91, %cst_41 [0] : vector<160x128xf32> to vector<128xf32>
    %93 = vector.shape_cast %92 : vector<128xf32> to vector<1x128xf32>
    %cst_42 = arith.constant 0.000000e+00 : f32
    %94 = vector.broadcast %cst_42 : f32 to vector<160x128xf32>
    %95 = arith.select %89, %24, %94 : vector<160x128xi1>, vector<160x128xf32>
    %cst_43 = arith.constant dense<0.000000e+00> : vector<128xf32>
    %96 = vector.multi_reduction <add>, %95, %cst_43 [0] : vector<160x128xf32> to vector<128xf32>
    %97 = vector.shape_cast %96 : vector<128xf32> to vector<1x128xf32>
    %c0_44 = arith.constant 0 : index
    %c2 = arith.constant 2 : index
    %c0_45 = arith.constant 0 : index
    %98 = vector.load %arg4[%c0_44, %c2, %c0_45] : memref<1x16x128xf32, #tpu.memory_space<vmem>>, vector<1x1x128xf32>
    %99 = vector.shape_cast %98 : vector<1x1x128xf32> to vector<1x128xf32>
    %100 = arith.addf %99, %93 : vector<1x128xf32>
    %c0_46 = arith.constant 0 : index
    %c2_47 = arith.constant 2 : index
    %c0_48 = arith.constant 0 : index
    %101 = vector.load %arg4[%c0_46, %c2_47, %c0_48] : memref<1x16x128xf32, #tpu.memory_space<vmem>>, vector<1x1x128xf32>
    %102 = vector.shape_cast %101 : vector<1x1x128xf32> to vector<1x128xf32>
    %103 = vector.shape_cast %100 : vector<1x128xf32> to vector<1x1x128xf32>
    tpu.vector_store %arg4[%c0_46, %c2_47, %c0_48], %103 {strides = array<i32>} : memref<1x16x128xf32, #tpu.memory_space<vmem>>, vector<1x1x128xf32>,
    %c0_49 = arith.constant 0 : index
    %c2_50 = arith.constant 2 : index
    %c0_51 = arith.constant 0 : index
    %104 = vector.load %arg5[%c0_49, %c2_50, %c0_51] : memref<1x16x128xf32, #tpu.memory_space<vmem>>, vector<1x1x128xf32>
    %105 = vector.shape_cast %104 : vector<1x1x128xf32> to vector<1x128xf32>
    %106 = arith.addf %105, %97 : vector<1x128xf32>
    %c0_52 = arith.constant 0 : index
    %c2_53 = arith.constant 2 : index
    %c0_54 = arith.constant 0 : index
    %107 = vector.load %arg5[%c0_52, %c2_53, %c0_54] : memref<1x16x128xf32, #tpu.memory_space<vmem>>, vector<1x1x128xf32>
    %108 = vector.shape_cast %107 : vector<1x1x128xf32> to vector<1x128xf32>
    %109 = vector.shape_cast %106 : vector<1x128xf32> to vector<1x1x128xf32>
    tpu.vector_store %arg5[%c0_52, %c2_53, %c0_54], %109 {strides = array<i32>} : memref<1x16x128xf32, #tpu.memory_space<vmem>>, vector<1x1x128xf32>,
    %c3_i32 = arith.constant 3 : i32
    %110 = vector.broadcast %c3_i32 : i32 to vector<160x128xi32>
    %111 = arith.cmpi eq, %43, %110 : vector<160x128xi32>
    %112 = arith.extui %111 : vector<160x128xi1> to vector<160x128xi32>
    %113 = arith.sitofp %112 : vector<160x128xi32> to vector<160x128xf32>
    %cst_55 = arith.constant dense<0.000000e+00> : vector<128xf32>
    %114 = vector.multi_reduction <add>, %113, %cst_55 [0] : vector<160x128xf32> to vector<128xf32>
    %115 = vector.shape_cast %114 : vector<128xf32> to vector<1x128xf32>
    %cst_56 = arith.constant 0.000000e+00 : f32
    %116 = vector.broadcast %cst_56 : f32 to vector<160x128xf32>
    %117 = arith.select %111, %24, %116 : vector<160x128xi1>, vector<160x128xf32>
    %cst_57 = arith.constant dense<0.000000e+00> : vector<128xf32>
    %118 = vector.multi_reduction <add>, %117, %cst_57 [0] : vector<160x128xf32> to vector<128xf32>
    %119 = vector.shape_cast %118 : vector<128xf32> to vector<1x128xf32>
    %c0_58 = arith.constant 0 : index
    %c3 = arith.constant 3 : index
    %c0_59 = arith.constant 0 : index
    %120 = vector.load %arg4[%c0_58, %c3, %c0_59] : memref<1x16x128xf32, #tpu.memory_space<vmem>>, vector<1x1x128xf32>
    %121 = vector.shape_cast %120 : vector<1x1x128xf32> to vector<1x128xf32>
    %122 = arith.addf %121, %115 : vector<1x128xf32>
    %c0_60 = arith.constant 0 : index
    %c3_61 = arith.constant 3 : index
    %c0_62 = arith.constant 0 : index
    %123 = vector.load %arg4[%c0_60, %c3_61, %c0_62] : memref<1x16x128xf32, #tpu.memory_space<vmem>>, vector<1x1x128xf32>
    %124 = vector.shape_cast %123 : vector<1x1x128xf32> to vector<1x128xf32>
    %125 = vector.shape_cast %122 : vector<1x128xf32> to vector<1x1x128xf32>
    tpu.vector_store %arg4[%c0_60, %c3_61, %c0_62], %125 {strides = array<i32>} : memref<1x16x128xf32, #tpu.memory_space<vmem>>, vector<1x1x128xf32>,
    %c0_63 = arith.constant 0 : index
    %c3_64 = arith.constant 3 : index
    %c0_65 = arith.constant 0 : index
    %126 = vector.load %arg5[%c0_63, %c3_64, %c0_65] : memref<1x16x128xf32, #tpu.memory_space<vmem>>, vector<1x1x128xf32>
    %127 = vector.shape_cast %126 : vector<1x1x128xf32> to vector<1x128xf32>
    %128 = arith.addf %127, %119 : vector<1x128xf32>
    %c0_66 = arith.constant 0 : index
    %c3_67 = arith.constant 3 : index
    %c0_68 = arith.constant 0 : index
    %129 = vector.load %arg5[%c0_66, %c3_67, %c0_68] : memref<1x16x128xf32, #tpu.memory_space<vmem>>, vector<1x1x128xf32>
    %130 = vector.shape_cast %129 : vector<1x1x128xf32> to vector<1x128xf32>
    %131 = vector.shape_cast %128 : vector<1x128xf32> to vector<1x1x128xf32>
    tpu.vector_store %arg5[%c0_66, %c3_67, %c0_68], %131 {strides = array<i32>} : memref<1x16x128xf32, #tpu.memory_space<vmem>>, vector<1x1x128xf32>,
    %c4_i32 = arith.constant 4 : i32
    %132 = vector.broadcast %c4_i32 : i32 to vector<160x128xi32>
    %133 = arith.cmpi eq, %43, %132 : vector<160x128xi32>
    %134 = arith.extui %133 : vector<160x128xi1> to vector<160x128xi32>
    %135 = arith.sitofp %134 : vector<160x128xi32> to vector<160x128xf32>
    %cst_69 = arith.constant dense<0.000000e+00> : vector<128xf32>
    %136 = vector.multi_reduction <add>, %135, %cst_69 [0] : vector<160x128xf32> to vector<128xf32>
    %137 = vector.shape_cast %136 : vector<128xf32> to vector<1x128xf32>
    %cst_70 = arith.constant 0.000000e+00 : f32
    %138 = vector.broadcast %cst_70 : f32 to vector<160x128xf32>
    %139 = arith.select %133, %24, %138 : vector<160x128xi1>, vector<160x128xf32>
    %cst_71 = arith.constant dense<0.000000e+00> : vector<128xf32>
    %140 = vector.multi_reduction <add>, %139, %cst_71 [0] : vector<160x128xf32> to vector<128xf32>
    %141 = vector.shape_cast %140 : vector<128xf32> to vector<1x128xf32>
    %c0_72 = arith.constant 0 : index
    %c4 = arith.constant 4 : index
    %c0_73 = arith.constant 0 : index
    %142 = vector.load %arg4[%c0_72, %c4, %c0_73] : memref<1x16x128xf32, #tpu.memory_space<vmem>>, vector<1x1x128xf32>
    %143 = vector.shape_cast %142 : vector<1x1x128xf32> to vector<1x128xf32>
    %144 = arith.addf %143, %137 : vector<1x128xf32>
    %c0_74 = arith.constant 0 : index
    %c4_75 = arith.constant 4 : index
    %c0_76 = arith.constant 0 : index
    %145 = vector.load %arg4[%c0_74, %c4_75, %c0_76] : memref<1x16x128xf32, #tpu.memory_space<vmem>>, vector<1x1x128xf32>
    %146 = vector.shape_cast %145 : vector<1x1x128xf32> to vector<1x128xf32>
    %147 = vector.shape_cast %144 : vector<1x128xf32> to vector<1x1x128xf32>
    tpu.vector_store %arg4[%c0_74, %c4_75, %c0_76], %147 {strides = array<i32>} : memref<1x16x128xf32, #tpu.memory_space<vmem>>, vector<1x1x128xf32>,
    %c0_77 = arith.constant 0 : index
    %c4_78 = arith.constant 4 : index
    %c0_79 = arith.constant 0 : index
    %148 = vector.load %arg5[%c0_77, %c4_78, %c0_79] : memref<1x16x128xf32, #tpu.memory_space<vmem>>, vector<1x1x128xf32>
    %149 = vector.shape_cast %148 : vector<1x1x128xf32> to vector<1x128xf32>
    %150 = arith.addf %149, %141 : vector<1x128xf32>
    %c0_80 = arith.constant 0 : index
    %c4_81 = arith.constant 4 : index
    %c0_82 = arith.constant 0 : index
    %151 = vector.load %arg5[%c0_80, %c4_81, %c0_82] : memref<1x16x128xf32, #tpu.memory_space<vmem>>, vector<1x1x128xf32>
    %152 = vector.shape_cast %151 : vector<1x1x128xf32> to vector<1x128xf32>
    %153 = vector.shape_cast %150 : vector<1x128xf32> to vector<1x1x128xf32>
    tpu.vector_store %arg5[%c0_80, %c4_81, %c0_82], %153 {strides = array<i32>} : memref<1x16x128xf32, #tpu.memory_space<vmem>>, vector<1x1x128xf32>,
    %c5_i32 = arith.constant 5 : i32
    %154 = vector.broadcast %c5_i32 : i32 to vector<160x128xi32>
    %155 = arith.cmpi eq, %43, %154 : vector<160x128xi32>
    %156 = arith.extui %155 : vector<160x128xi1> to vector<160x128xi32>
    %157 = arith.sitofp %156 : vector<160x128xi32> to vector<160x128xf32>
    %cst_83 = arith.constant dense<0.000000e+00> : vector<128xf32>
    %158 = vector.multi_reduction <add>, %157, %cst_83 [0] : vector<160x128xf32> to vector<128xf32>
    %159 = vector.shape_cast %158 : vector<128xf32> to vector<1x128xf32>
    %cst_84 = arith.constant 0.000000e+00 : f32
    %160 = vector.broadcast %cst_84 : f32 to vector<160x128xf32>
    %161 = arith.select %155, %24, %160 : vector<160x128xi1>, vector<160x128xf32>
    %cst_85 = arith.constant dense<0.000000e+00> : vector<128xf32>
    %162 = vector.multi_reduction <add>, %161, %cst_85 [0] : vector<160x128xf32> to vector<128xf32>
    %163 = vector.shape_cast %162 : vector<128xf32> to vector<1x128xf32>
    %c0_86 = arith.constant 0 : index
    %c5 = arith.constant 5 : index
    %c0_87 = arith.constant 0 : index
    %164 = vector.load %arg4[%c0_86, %c5, %c0_87] : memref<1x16x128xf32, #tpu.memory_space<vmem>>, vector<1x1x128xf32>
    %165 = vector.shape_cast %164 : vector<1x1x128xf32> to vector<1x128xf32>
    %166 = arith.addf %165, %159 : vector<1x128xf32>
    %c0_88 = arith.constant 0 : index
    %c5_89 = arith.constant 5 : index
    %c0_90 = arith.constant 0 : index
    %167 = vector.load %arg4[%c0_88, %c5_89, %c0_90] : memref<1x16x128xf32, #tpu.memory_space<vmem>>, vector<1x1x128xf32>
    %168 = vector.shape_cast %167 : vector<1x1x128xf32> to vector<1x128xf32>
    %169 = vector.shape_cast %166 : vector<1x128xf32> to vector<1x1x128xf32>
    tpu.vector_store %arg4[%c0_88, %c5_89, %c0_90], %169 {strides = array<i32>} : memref<1x16x128xf32, #tpu.memory_space<vmem>>, vector<1x1x128xf32>,
    %c0_91 = arith.constant 0 : index
    %c5_92 = arith.constant 5 : index
    %c0_93 = arith.constant 0 : index
    %170 = vector.load %arg5[%c0_91, %c5_92, %c0_93] : memref<1x16x128xf32, #tpu.memory_space<vmem>>, vector<1x1x128xf32>
    %171 = vector.shape_cast %170 : vector<1x1x128xf32> to vector<1x128xf32>
    %172 = arith.addf %171, %163 : vector<1x128xf32>
    %c0_94 = arith.constant 0 : index
    %c5_95 = arith.constant 5 : index
    %c0_96 = arith.constant 0 : index
    %173 = vector.load %arg5[%c0_94, %c5_95, %c0_96] : memref<1x16x128xf32, #tpu.memory_space<vmem>>, vector<1x1x128xf32>
    %174 = vector.shape_cast %173 : vector<1x1x128xf32> to vector<1x128xf32>
    %175 = vector.shape_cast %172 : vector<1x128xf32> to vector<1x1x128xf32>
    tpu.vector_store %arg5[%c0_94, %c5_95, %c0_96], %175 {strides = array<i32>} : memref<1x16x128xf32, #tpu.memory_space<vmem>>, vector<1x1x128xf32>,
    %c6_i32 = arith.constant 6 : i32
    %176 = vector.broadcast %c6_i32 : i32 to vector<160x128xi32>
    %177 = arith.cmpi eq, %43, %176 : vector<160x128xi32>
    %178 = arith.extui %177 : vector<160x128xi1> to vector<160x128xi32>
    %179 = arith.sitofp %178 : vector<160x128xi32> to vector<160x128xf32>
    %cst_97 = arith.constant dense<0.000000e+00> : vector<128xf32>
    %180 = vector.multi_reduction <add>, %179, %cst_97 [0] : vector<160x128xf32> to vector<128xf32>
    %181 = vector.shape_cast %180 : vector<128xf32> to vector<1x128xf32>
    %cst_98 = arith.constant 0.000000e+00 : f32
    %182 = vector.broadcast %cst_98 : f32 to vector<160x128xf32>
    %183 = arith.select %177, %24, %182 : vector<160x128xi1>, vector<160x128xf32>
    %cst_99 = arith.constant dense<0.000000e+00> : vector<128xf32>
    %184 = vector.multi_reduction <add>, %183, %cst_99 [0] : vector<160x128xf32> to vector<128xf32>
    %185 = vector.shape_cast %184 : vector<128xf32> to vector<1x128xf32>
    %c0_100 = arith.constant 0 : index
    %c6 = arith.constant 6 : index
    %c0_101 = arith.constant 0 : index
    %186 = vector.load %arg4[%c0_100, %c6, %c0_101] : memref<1x16x128xf32, #tpu.memory_space<vmem>>, vector<1x1x128xf32>
    %187 = vector.shape_cast %186 : vector<1x1x128xf32> to vector<1x128xf32>
    %188 = arith.addf %187, %181 : vector<1x128xf32>
    %c0_102 = arith.constant 0 : index
    %c6_103 = arith.constant 6 : index
    %c0_104 = arith.constant 0 : index
    %189 = vector.load %arg4[%c0_102, %c6_103, %c0_104] : memref<1x16x128xf32, #tpu.memory_space<vmem>>, vector<1x1x128xf32>
    %190 = vector.shape_cast %189 : vector<1x1x128xf32> to vector<1x128xf32>
    %191 = vector.shape_cast %188 : vector<1x128xf32> to vector<1x1x128xf32>
    tpu.vector_store %arg4[%c0_102, %c6_103, %c0_104], %191 {strides = array<i32>} : memref<1x16x128xf32, #tpu.memory_space<vmem>>, vector<1x1x128xf32>,
    %c0_105 = arith.constant 0 : index
    %c6_106 = arith.constant 6 : index
    %c0_107 = arith.constant 0 : index
    %192 = vector.load %arg5[%c0_105, %c6_106, %c0_107] : memref<1x16x128xf32, #tpu.memory_space<vmem>>, vector<1x1x128xf32>
    %193 = vector.shape_cast %192 : vector<1x1x128xf32> to vector<1x128xf32>
    %194 = arith.addf %193, %185 : vector<1x128xf32>
    %c0_108 = arith.constant 0 : index
    %c6_109 = arith.constant 6 : index
    %c0_110 = arith.constant 0 : index
    %195 = vector.load %arg5[%c0_108, %c6_109, %c0_110] : memref<1x16x128xf32, #tpu.memory_space<vmem>>, vector<1x1x128xf32>
    %196 = vector.shape_cast %195 : vector<1x1x128xf32> to vector<1x128xf32>
    %197 = vector.shape_cast %194 : vector<1x128xf32> to vector<1x1x128xf32>
    tpu.vector_store %arg5[%c0_108, %c6_109, %c0_110], %197 {strides = array<i32>} : memref<1x16x128xf32, #tpu.memory_space<vmem>>, vector<1x1x128xf32>,
    %c7_i32 = arith.constant 7 : i32
    %198 = vector.broadcast %c7_i32 : i32 to vector<160x128xi32>
    %199 = arith.cmpi eq, %43, %198 : vector<160x128xi32>
    %200 = arith.extui %199 : vector<160x128xi1> to vector<160x128xi32>
    %201 = arith.sitofp %200 : vector<160x128xi32> to vector<160x128xf32>
    %cst_111 = arith.constant dense<0.000000e+00> : vector<128xf32>
    %202 = vector.multi_reduction <add>, %201, %cst_111 [0] : vector<160x128xf32> to vector<128xf32>
    %203 = vector.shape_cast %202 : vector<128xf32> to vector<1x128xf32>
    %cst_112 = arith.constant 0.000000e+00 : f32
    %204 = vector.broadcast %cst_112 : f32 to vector<160x128xf32>
    %205 = arith.select %199, %24, %204 : vector<160x128xi1>, vector<160x128xf32>
    %cst_113 = arith.constant dense<0.000000e+00> : vector<128xf32>
    %206 = vector.multi_reduction <add>, %205, %cst_113 [0] : vector<160x128xf32> to vector<128xf32>
    %207 = vector.shape_cast %206 : vector<128xf32> to vector<1x128xf32>
    %c0_114 = arith.constant 0 : index
    %c7 = arith.constant 7 : index
    %c0_115 = arith.constant 0 : index
    %208 = vector.load %arg4[%c0_114, %c7, %c0_115] : memref<1x16x128xf32, #tpu.memory_space<vmem>>, vector<1x1x128xf32>
    %209 = vector.shape_cast %208 : vector<1x1x128xf32> to vector<1x128xf32>
    %210 = arith.addf %209, %203 : vector<1x128xf32>
    %c0_116 = arith.constant 0 : index
    %c7_117 = arith.constant 7 : index
    %c0_118 = arith.constant 0 : index
    %211 = vector.load %arg4[%c0_116, %c7_117, %c0_118] : memref<1x16x128xf32, #tpu.memory_space<vmem>>, vector<1x1x128xf32>
    %212 = vector.shape_cast %211 : vector<1x1x128xf32> to vector<1x128xf32>
    %213 = vector.shape_cast %210 : vector<1x128xf32> to vector<1x1x128xf32>
    tpu.vector_store %arg4[%c0_116, %c7_117, %c0_118], %213 {strides = array<i32>} : memref<1x16x128xf32, #tpu.memory_space<vmem>>, vector<1x1x128xf32>,
    %c0_119 = arith.constant 0 : index
    %c7_120 = arith.constant 7 : index
    %c0_121 = arith.constant 0 : index
    %214 = vector.load %arg5[%c0_119, %c7_120, %c0_121] : memref<1x16x128xf32, #tpu.memory_space<vmem>>, vector<1x1x128xf32>
    %215 = vector.shape_cast %214 : vector<1x1x128xf32> to vector<1x128xf32>
    %216 = arith.addf %215, %207 : vector<1x128xf32>
    %c0_122 = arith.constant 0 : index
    %c7_123 = arith.constant 7 : index
    %c0_124 = arith.constant 0 : index
    %217 = vector.load %arg5[%c0_122, %c7_123, %c0_124] : memref<1x16x128xf32, #tpu.memory_space<vmem>>, vector<1x1x128xf32>
    %218 = vector.shape_cast %217 : vector<1x1x128xf32> to vector<1x128xf32>
    %219 = vector.shape_cast %216 : vector<1x128xf32> to vector<1x1x128xf32>
    tpu.vector_store %arg5[%c0_122, %c7_123, %c0_124], %219 {strides = array<i32>} : memref<1x16x128xf32, #tpu.memory_space<vmem>>, vector<1x1x128xf32>,
    %c8_i32 = arith.constant 8 : i32
    %220 = vector.broadcast %c8_i32 : i32 to vector<160x128xi32>
    %221 = arith.cmpi eq, %43, %220 : vector<160x128xi32>
    %222 = arith.extui %221 : vector<160x128xi1> to vector<160x128xi32>
    %223 = arith.sitofp %222 : vector<160x128xi32> to vector<160x128xf32>
    %cst_125 = arith.constant dense<0.000000e+00> : vector<128xf32>
    %224 = vector.multi_reduction <add>, %223, %cst_125 [0] : vector<160x128xf32> to vector<128xf32>
    %225 = vector.shape_cast %224 : vector<128xf32> to vector<1x128xf32>
    %cst_126 = arith.constant 0.000000e+00 : f32
    %226 = vector.broadcast %cst_126 : f32 to vector<160x128xf32>
    %227 = arith.select %221, %24, %226 : vector<160x128xi1>, vector<160x128xf32>
    %cst_127 = arith.constant dense<0.000000e+00> : vector<128xf32>
    %228 = vector.multi_reduction <add>, %227, %cst_127 [0] : vector<160x128xf32> to vector<128xf32>
    %229 = vector.shape_cast %228 : vector<128xf32> to vector<1x128xf32>
    %c0_128 = arith.constant 0 : index
    %c8 = arith.constant 8 : index
    %c0_129 = arith.constant 0 : index
    %230 = vector.load %arg4[%c0_128, %c8, %c0_129] : memref<1x16x128xf32, #tpu.memory_space<vmem>>, vector<1x1x128xf32>
    %231 = vector.shape_cast %230 : vector<1x1x128xf32> to vector<1x128xf32>
    %232 = arith.addf %231, %225 : vector<1x128xf32>
    %c0_130 = arith.constant 0 : index
    %c8_131 = arith.constant 8 : index
    %c0_132 = arith.constant 0 : index
    %233 = vector.load %arg4[%c0_130, %c8_131, %c0_132] : memref<1x16x128xf32, #tpu.memory_space<vmem>>, vector<1x1x128xf32>
    %234 = vector.shape_cast %233 : vector<1x1x128xf32> to vector<1x128xf32>
    %235 = vector.shape_cast %232 : vector<1x128xf32> to vector<1x1x128xf32>
    tpu.vector_store %arg4[%c0_130, %c8_131, %c0_132], %235 {strides = array<i32>} : memref<1x16x128xf32, #tpu.memory_space<vmem>>, vector<1x1x128xf32>,
    %c0_133 = arith.constant 0 : index
    %c8_134 = arith.constant 8 : index
    %c0_135 = arith.constant 0 : index
    %236 = vector.load %arg5[%c0_133, %c8_134, %c0_135] : memref<1x16x128xf32, #tpu.memory_space<vmem>>, vector<1x1x128xf32>
    %237 = vector.shape_cast %236 : vector<1x1x128xf32> to vector<1x128xf32>
    %238 = arith.addf %237, %229 : vector<1x128xf32>
    %c0_136 = arith.constant 0 : index
    %c8_137 = arith.constant 8 : index
    %c0_138 = arith.constant 0 : index
    %239 = vector.load %arg5[%c0_136, %c8_137, %c0_138] : memref<1x16x128xf32, #tpu.memory_space<vmem>>, vector<1x1x128xf32>
    %240 = vector.shape_cast %239 : vector<1x1x128xf32> to vector<1x128xf32>
    %241 = vector.shape_cast %238 : vector<1x128xf32> to vector<1x1x128xf32>
    tpu.vector_store %arg5[%c0_136, %c8_137, %c0_138], %241 {strides = array<i32>} : memref<1x16x128xf32, #tpu.memory_space<vmem>>, vector<1x1x128xf32>,
    %c9_i32 = arith.constant 9 : i32
    %242 = vector.broadcast %c9_i32 : i32 to vector<160x128xi32>
    %243 = arith.cmpi eq, %43, %242 : vector<160x128xi32>
    %244 = arith.extui %243 : vector<160x128xi1> to vector<160x128xi32>
    %245 = arith.sitofp %244 : vector<160x128xi32> to vector<160x128xf32>
    %cst_139 = arith.constant dense<0.000000e+00> : vector<128xf32>
    %246 = vector.multi_reduction <add>, %245, %cst_139 [0] : vector<160x128xf32> to vector<128xf32>
    %247 = vector.shape_cast %246 : vector<128xf32> to vector<1x128xf32>
    %cst_140 = arith.constant 0.000000e+00 : f32
    %248 = vector.broadcast %cst_140 : f32 to vector<160x128xf32>
    %249 = arith.select %243, %24, %248 : vector<160x128xi1>, vector<160x128xf32>
    %cst_141 = arith.constant dense<0.000000e+00> : vector<128xf32>
    %250 = vector.multi_reduction <add>, %249, %cst_141 [0] : vector<160x128xf32> to vector<128xf32>
    %251 = vector.shape_cast %250 : vector<128xf32> to vector<1x128xf32>
    %c0_142 = arith.constant 0 : index
    %c9 = arith.constant 9 : index
    %c0_143 = arith.constant 0 : index
    %252 = vector.load %arg4[%c0_142, %c9, %c0_143] : memref<1x16x128xf32, #tpu.memory_space<vmem>>, vector<1x1x128xf32>
    %253 = vector.shape_cast %252 : vector<1x1x128xf32> to vector<1x128xf32>
    %254 = arith.addf %253, %247 : vector<1x128xf32>
    %c0_144 = arith.constant 0 : index
    %c9_145 = arith.constant 9 : index
    %c0_146 = arith.constant 0 : index
    %255 = vector.load %arg4[%c0_144, %c9_145, %c0_146] : memref<1x16x128xf32, #tpu.memory_space<vmem>>, vector<1x1x128xf32>
    %256 = vector.shape_cast %255 : vector<1x1x128xf32> to vector<1x128xf32>
    %257 = vector.shape_cast %254 : vector<1x128xf32> to vector<1x1x128xf32>
    tpu.vector_store %arg4[%c0_144, %c9_145, %c0_146], %257 {strides = array<i32>} : memref<1x16x128xf32, #tpu.memory_space<vmem>>, vector<1x1x128xf32>,
    %c0_147 = arith.constant 0 : index
    %c9_148 = arith.constant 9 : index
    %c0_149 = arith.constant 0 : index
    %258 = vector.load %arg5[%c0_147, %c9_148, %c0_149] : memref<1x16x128xf32, #tpu.memory_space<vmem>>, vector<1x1x128xf32>
    %259 = vector.shape_cast %258 : vector<1x1x128xf32> to vector<1x128xf32>
    %260 = arith.addf %259, %251 : vector<1x128xf32>
    %c0_150 = arith.constant 0 : index
    %c9_151 = arith.constant 9 : index
    %c0_152 = arith.constant 0 : index
    %261 = vector.load %arg5[%c0_150, %c9_151, %c0_152] : memref<1x16x128xf32, #tpu.memory_space<vmem>>, vector<1x1x128xf32>
    %262 = vector.shape_cast %261 : vector<1x1x128xf32> to vector<1x128xf32>
    %263 = vector.shape_cast %260 : vector<1x128xf32> to vector<1x1x128xf32>
    tpu.vector_store %arg5[%c0_150, %c9_151, %c0_152], %263 {strides = array<i32>} : memref<1x16x128xf32, #tpu.memory_space<vmem>>, vector<1x1x128xf32>,
    return
  }
  func.func @transform_0(%arg0: i32, %arg1: i32) -> (i32, i32) {
    %c1_i32 = arith.constant 1 : i32
    %0 = arith.muli %arg0, %c1_i32 : i32
    %1 = arith.addi %0, %arg1 : i32
    %c0_i32 = arith.constant 0 : i32
    %2 = arith.minsi %1, %c0_i32 : i32
    %c0_i32_0 = arith.constant 0 : i32
    %c0_i32_1 = arith.constant 0 : i32
    return %2, %c0_i32_0 : i32, i32
  }
  func.func @transform_1(%arg0: i32, %arg1: i32) -> (i32, i32) {
    %c1_i32 = arith.constant 1 : i32
    %0 = arith.muli %arg0, %c1_i32 : i32
    %1 = arith.addi %0, %arg1 : i32
    %c0_i32 = arith.constant 0 : i32
    %2 = arith.minsi %1, %c0_i32 : i32
    %c0_i32_0 = arith.constant 0 : i32
    %c0_i32_1 = arith.constant 0 : i32
    return %2, %c0_i32_0 : i32, i32
  }
  func.func @transform_2(%arg0: i32, %arg1: i32) -> (i32, i32, i32) {
    %c0_i32 = arith.constant 0 : i32
    %c0_i32_0 = arith.constant 0 : i32
    %c0_i32_1 = arith.constant 0 : i32
    return %arg0, %c0_i32, %c0_i32_0 : i32, i32, i32
  }
  func.func @transform_3(%arg0: i32, %arg1: i32) -> (i32, i32, i32) {
    %c0_i32 = arith.constant 0 : i32
    %c0_i32_0 = arith.constant 0 : i32
    %c0_i32_1 = arith.constant 0 : i32
    return %arg0, %c0_i32, %c0_i32_0 : i32, i32, i32
  }
}

</mosaic_0001>

<llo_original>
// kernel: tpu_custom_call.1
$region0: #{tpu_custom_call.1}
  #allocation0 [shape = 'u32[]', space=smem, size = 0x4, offset = 0x4, fixed_abs, tag = 'smem constant byte address 0x4 - core index']
  #allocation1 [shape = 'u32[72,128]{1,0:T(1,128)}', space=vmem, size = 0x9000, scoped, tag = 'internal scratch']
  %s0 = inlined_call_operand.hbm [shape: f32[160,128], index: 0, kind: input, shape index: {}]
  %s1 = inlined_call_operand.hbm [shape: f32[160,128], index: 1, kind: input, shape index: {}]
  %s2 = inlined_call_operand.hbm [shape: f32[1,16,128], index: 2, kind: output, shape index: {0}]
  %s3 = inlined_call_operand.hbm [shape: f32[1,16,128], index: 3, kind: output, shape index: {1}]
  %4 = xla_tuple %s2, %s3
  %s5 = sld [smem:[#allocation0]]
  $region38: #{tpu_custom_call.1} parent=0
    _
  %s7 = ssub.s32 1, %s5
  %s8 = scalar_select 0, %s7, %s5
  $region1: #{tpu_custom_call.1} parent=0
    #allocation2 [shape = 'u8[81920]{0}', space=vmem, size = 0x14000, scoped, tag = 'input window, operand 0, single buffered']
    #allocation3 [shape = 's32[1]{0}', space=sflag, size = 0x4, scoped, tag = 'scoped memory for tpu_custom_call.1']
    #allocation4 [shape = 's32[1]{0}', space=sflag, size = 0x4, scoped, tag = 'scoped memory for tpu_custom_call.1']
    #allocation5 [shape = 'u8[81920]{0}', space=vmem, size = 0x14000, scoped, tag = 'input window, operand 1, single buffered']
    #allocation6 [shape = 's32[1]{0}', space=sflag, size = 0x4, scoped, tag = 'scoped memory for tpu_custom_call.1']
    #allocation7 [shape = 'u8[8192]{0}', space=vmem, size = 0x2000, scoped, tag = 'output window, operand 0, single buffered']
    #allocation8 [shape = 'u8[8192]{0}', space=vmem, size = 0x2000, scoped, tag = 'output window, operand 1, single buffered']
    #allocation9 [shape = 's32[1]{0}', space=sflag, size = 0x4, scoped, tag = 'scoped memory for tpu_custom_call.1']
    %9 = vsyncpa [#allocation3], 0
    %10 = vsyncpa [#allocation6], 0
    %11 = vsyncpa [#allocation4], 0
    %12 = vsyncpa [#allocation9], 0
    // Predicated region
    $region2: #{tpu_custom_call.1} parent=1 // pred_check
      _
    $region3: #{tpu_custom_call.1} parent=1 // pred_check_branch
      %14 = sbr.rel (0) target = $region5
    $region4: #{tpu_custom_call.1} parent=1 // pred_region
      %s15 = sadd.s32 0, 0
      %p16 = scmp.lt.s32.totalorder %s15, 0
      %s17 = scalar_select %p16, %s15, 0
      %s18 = smul.u32 20, %s17
      %20 = vsyncadd [#allocation3], 0
      %s21 = smul.addr %s18, 8
      %s22 = scalar_lea.hbm %s0, %s21
      %s23 = sshll.u32 %s22, 4
      %s24 = int_to_ptr.hbm [resolvable:$true] %s23
      %s25 = sshll.u32 [#allocation2], 4
      %s26 = int_to_ptr.vmem [resolvable:$true] %s25
      %31 = dma.hbm_to_vmem [thread:$0]  %s24, 2560, %s26, [#allocation3], 128, 128, 8
    $region5: #{tpu_custom_call.1} parent=1 // pred_fallthru
      _
    // Predicated region
    $region6: #{tpu_custom_call.1} parent=1 // pred_check
      _
    $region7: #{tpu_custom_call.1} parent=1 // pred_check_branch
      %33 = sbr.rel (0) target = $region9
    $region8: #{tpu_custom_call.1} parent=1 // pred_region
      %s34 = sadd.s32 0, 0
      %p35 = scmp.lt.s32.totalorder %s34, 0
      %s36 = scalar_select %p35, %s34, 0
      %s37 = smul.u32 20, %s36
      %39 = vsyncadd [#allocation6], 0
      %s40 = smul.addr %s37, 8
      %s41 = scalar_lea.hbm %s1, %s40
      %s42 = sshll.u32 %s41, 4
      %s43 = int_to_ptr.hbm [resolvable:$true] %s42
      %s44 = sshll.u32 [#allocation5], 4
      %s45 = int_to_ptr.vmem [resolvable:$true] %s44
      %50 = dma.hbm_to_vmem [thread:$0]  %s43, 2560, %s45, [#allocation6], 128, 128, 8
    $region9: #{tpu_custom_call.1} parent=1 // pred_fallthru
      _
    // Predicated region
    $region10: #{tpu_custom_call.1} parent=1 // pred_check
      _
    $region11: #{tpu_custom_call.1} parent=1 // pred_check_branch
      %52 = sbr.rel (0) target = $region13
    $region12: #{tpu_custom_call.1} parent=1 // pred_region
      %54 = dma.done [#allocation3], 2560
    $region13: #{tpu_custom_call.1} parent=1 // pred_fallthru
      _
    // Predicated region
    $region14: #{tpu_custom_call.1} parent=1 // pred_check
      _
    $region15: #{tpu_custom_call.1} parent=1 // pred_check_branch
      %56 = sbr.rel (0) target = $region17
    $region16: #{tpu_custom_call.1} parent=1 // pred_region
      %58 = dma.done [#allocation6], 2560
    $region17: #{tpu_custom_call.1} parent=1 // pred_fallthru
      _
    %s59 = sadd.s32 0, 0
    %p60 = scmp.lt.s32.totalorder %s59, 0
    %s61 = scalar_select %p60, %s59, 0
    %s62 = smul.u32 20, %s61
    %s63 = sadd.s32 0, 0
    %p64 = scmp.lt.s32.totalorder %s63, 0
    %s65 = scalar_select %p64, %s63, 0
    %s66 = smul.u32 20, %s65
    %p67 = scmp.eq.s32.totalorder 0, 0
    // Predicated region
    $region18: #{tpu_custom_call.1} parent=1 // pred_check
      %p68 = pneg %p67
    $region19: #{tpu_custom_call.1} parent=1 // pred_check_branch
      %70 = sbr.rel (%p68) target = $region21
    $region20: #{tpu_custom_call.1} parent=1 // pred_region
      %71 = vst [vmem:[#allocation7] sm:$0xff] 0.0
      %72 = vst [vmem:[#allocation7 + $0x8] sm:$0xff] 0.0
      %73 = vst [vmem:[#allocation8] sm:$0xff] 0.0
      %74 = vst [vmem:[#allocation8 + $0x8] sm:$0xff] 0.0
    $region21: #{tpu_custom_call.1} parent=1 // pred_fallthru
      _
    %v75 = vld [vmem:[#allocation2] sm:$0xff]
    %v76 = vld [vmem:[#allocation2 + $0x8] sm:$0xff]
    %v77 = vld [vmem:[#allocation2 + $0x10] sm:$0xff]
    %v78 = vld [vmem:[#allocation2 + $0x18] sm:$0xff]
    %v79 = vld [vmem:[#allocation2 + $0x20] sm:$0xff]
    %v80 = vld [vmem:[#allocation2 + $0x28] sm:$0xff]
    %v81 = vld [vmem:[#allocation2 + $0x30] sm:$0xff]
    %v82 = vld [vmem:[#allocation2 + $0x38] sm:$0xff]
    %v83 = vld [vmem:[#allocation2 + $0x40] sm:$0xff]
    %v84 = vld [vmem:[#allocation2 + $0x48] sm:$0xff]
    %v85 = vld [vmem:[#allocation2 + $0x50] sm:$0xff]
    %v86 = vld [vmem:[#allocation2 + $0x58] sm:$0xff]
    %v87 = vld [vmem:[#allocation2 + $0x60] sm:$0xff]
    %v88 = vld [vmem:[#allocation2 + $0x68] sm:$0xff]
    %v89 = vld [vmem:[#allocation2 + $0x70] sm:$0xff]
    %v90 = vld [vmem:[#allocation2 + $0x78] sm:$0xff]
    %v91 = vld [vmem:[#allocation2 + $0x80] sm:$0xff]
    %v92 = vld [vmem:[#allocation2 + $0x88] sm:$0xff]
    %v93 = vld [vmem:[#allocation2 + $0x90] sm:$0xff]
    %v94 = vld [vmem:[#allocation2 + $0x98] sm:$0xff]
    %v95 = vld [vmem:[#allocation5] sm:$0xff]
    %v96 = vld [vmem:[#allocation5 + $0x8] sm:$0xff]
    %v97 = vld [vmem:[#allocation5 + $0x10] sm:$0xff]
    %v98 = vld [vmem:[#allocation5 + $0x18] sm:$0xff]
    %v99 = vld [vmem:[#allocation5 + $0x20] sm:$0xff]
    %v100 = vld [vmem:[#allocation5 + $0x28] sm:$0xff]
    %v101 = vld [vmem:[#allocation5 + $0x30] sm:$0xff]
    %v102 = vld [vmem:[#allocation5 + $0x38] sm:$0xff]
    %v103 = vld [vmem:[#allocation5 + $0x40] sm:$0xff]
    %v104 = vld [vmem:[#allocation5 + $0x48] sm:$0xff]
    %v105 = vld [vmem:[#allocation5 + $0x50] sm:$0xff]
    %v106 = vld [vmem:[#allocation5 + $0x58] sm:$0xff]
    %v107 = vld [vmem:[#allocation5 + $0x60] sm:$0xff]
    %v108 = vld [vmem:[#allocation5 + $0x68] sm:$0xff]
    %v109 = vld [vmem:[#allocation5 + $0x70] sm:$0xff]
    %v110 = vld [vmem:[#allocation5 + $0x78] sm:$0xff]
    %v111 = vld [vmem:[#allocation5 + $0x80] sm:$0xff]
    %v112 = vld [vmem:[#allocation5 + $0x88] sm:$0xff]
    %v113 = vld [vmem:[#allocation5 + $0x90] sm:$0xff]
    %v114 = vld [vmem:[#allocation5 + $0x98] sm:$0xff]
    %v115 = vxor.u32 %v75, 2147483648
    %v116 = vxor.u32 %v76, 2147483648
    %v117 = vxor.u32 %v77, 2147483648
    %v118 = vxor.u32 %v78, 2147483648
    %v119 = vxor.u32 %v79, 2147483648
    %v120 = vxor.u32 %v80, 2147483648
    %v121 = vxor.u32 %v81, 2147483648
    %v122 = vxor.u32 %v82, 2147483648
    %v123 = vxor.u32 %v83, 2147483648
    %v124 = vxor.u32 %v84, 2147483648
    %v125 = vxor.u32 %v85, 2147483648
    %v126 = vxor.u32 %v86, 2147483648
    %v127 = vxor.u32 %v87, 2147483648
    %v128 = vxor.u32 %v88, 2147483648
    %v129 = vxor.u32 %v89, 2147483648
    %v130 = vxor.u32 %v90, 2147483648
    %v131 = vxor.u32 %v91, 2147483648
    %v132 = vxor.u32 %v92, 2147483648
    %v133 = vxor.u32 %v93, 2147483648
    %v134 = vxor.u32 %v94, 2147483648
    %v135 = vmul.f32 %v115, 1.442695
    %v136 = vpow.pop %v135
    %v137 = vmul.f32 %v116, 1.442695
    %v138 = vpow.pop %v137
    %v139 = vmul.f32 %v117, 1.442695
    %v140 = vpow.pop %v139
    %v141 = vmul.f32 %v118, 1.442695
    %v142 = vpow.pop %v141
    %v143 = vmul.f32 %v119, 1.442695
    %v144 = vpow.pop %v143
    %v145 = vmul.f32 %v120, 1.442695
    %v146 = vpow.pop %v145
    %v147 = vmul.f32 %v121, 1.442695
    %v148 = vpow.pop %v147
    %v149 = vmul.f32 %v122, 1.442695
    %v150 = vpow.pop %v149
    %v151 = vmul.f32 %v123, 1.442695
    %v152 = vpow.pop %v151
    %v153 = vmul.f32 %v124, 1.442695
    %v154 = vpow.pop %v153
    %v155 = vmul.f32 %v125, 1.442695
    %v156 = vpow.pop %v155
    %v157 = vmul.f32 %v126, 1.442695
    %v158 = vpow.pop %v157
    %v159 = vmul.f32 %v127, 1.442695
    %v160 = vpow.pop %v159
    %v161 = vmul.f32 %v128, 1.442695
    %v162 = vpow.pop %v161
    %v163 = vmul.f32 %v129, 1.442695
    %v164 = vpow.pop %v163
    %v165 = vmul.f32 %v130, 1.442695
    %v166 = vpow.pop %v165
    %v167 = vmul.f32 %v131, 1.442695
    %v168 = vpow.pop %v167
    %v169 = vmul.f32 %v132, 1.442695
    %v170 = vpow.pop %v169
    %v171 = vmul.f32 %v133, 1.442695
    %v172 = vpow.pop %v171
    %v173 = vmul.f32 %v134, 1.442695
    %v174 = vpow.pop %v173
    %v175 = vadd.f32 %v136, 1.0
    %v176 = vadd.f32 %v138, 1.0
    %v177 = vadd.f32 %v140, 1.0
    %v178 = vadd.f32 %v142, 1.0
    %v179 = vadd.f32 %v144, 1.0
    %v180 = vadd.f32 %v146, 1.0
    %v181 = vadd.f32 %v148, 1.0
    %v182 = vadd.f32 %v150, 1.0
    %v183 = vadd.f32 %v152, 1.0
    %v184 = vadd.f32 %v154, 1.0
    %v185 = vadd.f32 %v156, 1.0
    %v186 = vadd.f32 %v158, 1.0
    %v187 = vadd.f32 %v160, 1.0
    %v188 = vadd.f32 %v162, 1.0
    %v189 = vadd.f32 %v164, 1.0
    %v190 = vadd.f32 %v166, 1.0
    %v191 = vadd.f32 %v168, 1.0
    %v192 = vadd.f32 %v170, 1.0
    %v193 = vadd.f32 %v172, 1.0
    %v194 = vadd.f32 %v174, 1.0
    %v195 = vrcp.pop %v175
    %v196 = vmul.f32 %v175, %v195
    %v197 = vsub.f32 1.0, %v196
    %v198 = vmul.f32 %v195, %v197
    %v199 = vadd.f32 %v195, %v198
    %vm200 = vweird.f32 %v175
    %vm201 = vweird.f32 %v195
    %vm202 = vmor %vm200, %vm201
    %v203 = vsel %vm202, %v195, %v199
    %v204 = vand.u32 2147483647, %v175
    %vm205 = vcmp.eq.f32.partialorder %v204, 8.507059e+37
    %v206 = vand.u32 %v175, 2147483648
    %v207 = vor.u32 1.1754944e-38, %v206
    %v208 = vsel %vm205, %v207, %v203
    %v209 = vmul.f32 1.0, %v208
    %v210 = vrcp.pop %v176
    %v211 = vmul.f32 %v176, %v210
    %v212 = vsub.f32 1.0, %v211
    %v213 = vmul.f32 %v210, %v212
    %v214 = vadd.f32 %v210, %v213
    %vm215 = vweird.f32 %v176
    %vm216 = vweird.f32 %v210
    %vm217 = vmor %vm215, %vm216
    %v218 = vsel %vm217, %v210, %v214
    %v219 = vand.u32 2147483647, %v176
    %vm220 = vcmp.eq.f32.partialorder %v219, 8.507059e+37
    %v221 = vand.u32 %v176, 2147483648
    %v222 = vor.u32 1.1754944e-38, %v221
    %v223 = vsel %vm220, %v222, %v218
    %v224 = vmul.f32 1.0, %v223
    %v225 = vrcp.pop %v177
    %v226 = vmul.f32 %v177, %v225
    %v227 = vsub.f32 1.0, %v226
    %v228 = vmul.f32 %v225, %v227
    %v229 = vadd.f32 %v225, %v228
    %vm230 = vweird.f32 %v177
    %vm231 = vweird.f32 %v225
    %vm232 = vmor %vm230, %vm231
    %v233 = vsel %vm232, %v225, %v229
    %v234 = vand.u32 2147483647, %v177
    %vm235 = vcmp.eq.f32.partialorder %v234, 8.507059e+37
    %v236 = vand.u32 %v177, 2147483648
    %v237 = vor.u32 1.1754944e-38, %v236
    %v238 = vsel %vm235, %v237, %v233
    %v239 = vmul.f32 1.0, %v238
    %v240 = vrcp.pop %v178
    %v241 = vmul.f32 %v178, %v240
    %v242 = vsub.f32 1.0, %v241
    %v243 = vmul.f32 %v240, %v242
    %v244 = vadd.f32 %v240, %v243
    %vm245 = vweird.f32 %v178
    %vm246 = vweird.f32 %v240
    %vm247 = vmor %vm245, %vm246
    %v248 = vsel %vm247, %v240, %v244
    %v249 = vand.u32 2147483647, %v178
    %vm250 = vcmp.eq.f32.partialorder %v249, 8.507059e+37
    %v251 = vand.u32 %v178, 2147483648
    %v252 = vor.u32 1.1754944e-38, %v251
    %v253 = vsel %vm250, %v252, %v248
    %v254 = vmul.f32 1.0, %v253
    %v255 = vrcp.pop %v179
    %v256 = vmul.f32 %v179, %v255
    %v257 = vsub.f32 1.0, %v256
    %v258 = vmul.f32 %v255, %v257
    %v259 = vadd.f32 %v255, %v258
    %vm260 = vweird.f32 %v179
    %vm261 = vweird.f32 %v255
    %vm262 = vmor %vm260, %vm261
    %v263 = vsel %vm262, %v255, %v259
    %v264 = vand.u32 2147483647, %v179
    %vm265 = vcmp.eq.f32.partialorder %v264, 8.507059e+37
    %v266 = vand.u32 %v179, 2147483648
    %v267 = vor.u32 1.1754944e-38, %v266
    %v268 = vsel %vm265, %v267, %v263
    %v269 = vmul.f32 1.0, %v268
    %v270 = vrcp.pop %v180
    %v271 = vmul.f32 %v180, %v270
    %v272 = vsub.f32 1.0, %v271
    %v273 = vmul.f32 %v270, %v272
    %v274 = vadd.f32 %v270, %v273
    %vm275 = vweird.f32 %v180
    %vm276 = vweird.f32 %v270
    %vm277 = vmor %vm275, %vm276
    %v278 = vsel %vm277, %v270, %v274
    %v279 = vand.u32 2147483647, %v180
    %vm280 = vcmp.eq.f32.partialorder %v279, 8.507059e+37
    %v281 = vand.u32 %v180, 2147483648
    %v282 = vor.u32 1.1754944e-38, %v281
    %v283 = vsel %vm280, %v282, %v278
    %v284 = vmul.f32 1.0, %v283
    %v285 = vrcp.pop %v181
    %v286 = vmul.f32 %v181, %v285
    %v287 = vsub.f32 1.0, %v286
    %v288 = vmul.f32 %v285, %v287
    %v289 = vadd.f32 %v285, %v288
    %vm290 = vweird.f32 %v181
    %vm291 = vweird.f32 %v285
    %vm292 = vmor %vm290, %vm291
    %v293 = vsel %vm292, %v285, %v289
    %v294 = vand.u32 2147483647, %v181
    %vm295 = vcmp.eq.f32.partialorder %v294, 8.507059e+37
    %v296 = vand.u32 %v181, 2147483648
    %v297 = vor.u32 1.1754944e-38, %v296
    %v298 = vsel %vm295, %v297, %v293
    %v299 = vmul.f32 1.0, %v298
    %v300 = vrcp.pop %v182
    %v301 = vmul.f32 %v182, %v300
    %v302 = vsub.f32 1.0, %v301
    %v303 = vmul.f32 %v300, %v302
    %v304 = vadd.f32 %v300, %v303
    %vm305 = vweird.f32 %v182
    %vm306 = vweird.f32 %v300
    %vm307 = vmor %vm305, %vm306
    %v308 = vsel %vm307, %v300, %v304
    %v309 = vand.u32 2147483647, %v182
    %vm310 = vcmp.eq.f32.partialorder %v309, 8.507059e+37
    %v311 = vand.u32 %v182, 2147483648
    %v312 = vor.u32 1.1754944e-38, %v311
    %v313 = vsel %vm310, %v312, %v308
    %v314 = vmul.f32 1.0, %v313
    %v315 = vrcp.pop %v183
    %v316 = vmul.f32 %v183, %v315
    %v317 = vsub.f32 1.0, %v316
    %v318 = vmul.f32 %v315, %v317
    %v319 = vadd.f32 %v315, %v318
    %vm320 = vweird.f32 %v183
    %vm321 = vweird.f32 %v315
    %vm322 = vmor %vm320, %vm321
    %v323 = vsel %vm322, %v315, %v319
    %v324 = vand.u32 2147483647, %v183
    %vm325 = vcmp.eq.f32.partialorder %v324, 8.507059e+37
    %v326 = vand.u32 %v183, 2147483648
    %v327 = vor.u32 1.1754944e-38, %v326
    %v328 = vsel %vm325, %v327, %v323
    %v329 = vmul.f32 1.0, %v328
    %v330 = vrcp.pop %v184
    %v331 = vmul.f32 %v184, %v330
    %v332 = vsub.f32 1.0, %v331
    %v333 = vmul.f32 %v330, %v332
    %v334 = vadd.f32 %v330, %v333
    %vm335 = vweird.f32 %v184
    %vm336 = vweird.f32 %v330
    %vm337 = vmor %vm335, %vm336
    %v338 = vsel %vm337, %v330, %v334
    %v339 = vand.u32 2147483647, %v184
    %vm340 = vcmp.eq.f32.partialorder %v339, 8.507059e+37
    %v341 = vand.u32 %v184, 2147483648
    %v342 = vor.u32 1.1754944e-38, %v341
    %v343 = vsel %vm340, %v342, %v338
    %v344 = vmul.f32 1.0, %v343
    %v345 = vrcp.pop %v185
    %v346 = vmul.f32 %v185, %v345
    %v347 = vsub.f32 1.0, %v346
    %v348 = vmul.f32 %v345, %v347
    %v349 = vadd.f32 %v345, %v348
    %vm350 = vweird.f32 %v185
    %vm351 = vweird.f32 %v345
    %vm352 = vmor %vm350, %vm351
    %v353 = vsel %vm352, %v345, %v349
    %v354 = vand.u32 2147483647, %v185
    %vm355 = vcmp.eq.f32.partialorder %v354, 8.507059e+37
    %v356 = vand.u32 %v185, 2147483648
    %v357 = vor.u32 1.1754944e-38, %v356
    %v358 = vsel %vm355, %v357, %v353
    %v359 = vmul.f32 1.0, %v358
    %v360 = vrcp.pop %v186
    %v361 = vmul.f32 %v186, %v360
    %v362 = vsub.f32 1.0, %v361
    %v363 = vmul.f32 %v360, %v362
    %v364 = vadd.f32 %v360, %v363
    %vm365 = vweird.f32 %v186
    %vm366 = vweird.f32 %v360
    %vm367 = vmor %vm365, %vm366
    %v368 = vsel %vm367, %v360, %v364
    %v369 = vand.u32 2147483647, %v186
    %vm370 = vcmp.eq.f32.partialorder %v369, 8.507059e+37
    %v371 = vand.u32 %v186, 2147483648
    %v372 = vor.u32 1.1754944e-38, %v371
    %v373 = vsel %vm370, %v372, %v368
    %v374 = vmul.f32 1.0, %v373
    %v375 = vrcp.pop %v187
    %v376 = vmul.f32 %v187, %v375
    %v377 = vsub.f32 1.0, %v376
    %v378 = vmul.f32 %v375, %v377
    %v379 = vadd.f32 %v375, %v378
    %vm380 = vweird.f32 %v187
    %vm381 = vweird.f32 %v375
    %vm382 = vmor %vm380, %vm381
    %v383 = vsel %vm382, %v375, %v379
    %v384 = vand.u32 2147483647, %v187
    %vm385 = vcmp.eq.f32.partialorder %v384, 8.507059e+37
    %v386 = vand.u32 %v187, 2147483648
    %v387 = vor.u32 1.1754944e-38, %v386
    %v388 = vsel %vm385, %v387, %v383
    %v389 = vmul.f32 1.0, %v388
    %v390 = vrcp.pop %v188
    %v391 = vmul.f32 %v188, %v390
    %v392 = vsub.f32 1.0, %v391
    %v393 = vmul.f32 %v390, %v392
    %v394 = vadd.f32 %v390, %v393
    %vm395 = vweird.f32 %v188
    %vm396 = vweird.f32 %v390
    %vm397 = vmor %vm395, %vm396
    %v398 = vsel %vm397, %v390, %v394
    %v399 = vand.u32 2147483647, %v188
    %vm400 = vcmp.eq.f32.partialorder %v399, 8.507059e+37
    %v401 = vand.u32 %v188, 2147483648
    %v402 = vor.u32 1.1754944e-38, %v401
    %v403 = vsel %vm400, %v402, %v398
    %v404 = vmul.f32 1.0, %v403
    %v405 = vrcp.pop %v189
    %v406 = vmul.f32 %v189, %v405
    %v407 = vsub.f32 1.0, %v406
    %v408 = vmul.f32 %v405, %v407
    %v409 = vadd.f32 %v405, %v408
    %vm410 = vweird.f32 %v189
    %vm411 = vweird.f32 %v405
    %vm412 = vmor %vm410, %vm411
    %v413 = vsel %vm412, %v405, %v409
    %v414 = vand.u32 2147483647, %v189
    %vm415 = vcmp.eq.f32.partialorder %v414, 8.507059e+37
    %v416 = vand.u32 %v189, 2147483648
    %v417 = vor.u32 1.1754944e-38, %v416
    %v418 = vsel %vm415, %v417, %v413
    %v419 = vmul.f32 1.0, %v418
    %v420 = vrcp.pop %v190
    %v421 = vmul.f32 %v190, %v420
    %v422 = vsub.f32 1.0, %v421
    %v423 = vmul.f32 %v420, %v422
    %v424 = vadd.f32 %v420, %v423
    %vm425 = vweird.f32 %v190
    %vm426 = vweird.f32 %v420
    %vm427 = vmor %vm425, %vm426
    %v428 = vsel %vm427, %v420, %v424
    %v429 = vand.u32 2147483647, %v190
    %vm430 = vcmp.eq.f32.partialorder %v429, 8.507059e+37
    %v431 = vand.u32 %v190, 2147483648
    %v432 = vor.u32 1.1754944e-38, %v431
    %v433 = vsel %vm430, %v432, %v428
    %v434 = vmul.f32 1.0, %v433
    %v435 = vrcp.pop %v191
    %v436 = vmul.f32 %v191, %v435
    %v437 = vsub.f32 1.0, %v436
    %v438 = vmul.f32 %v435, %v437
    %v439 = vadd.f32 %v435, %v438
    %vm440 = vweird.f32 %v191
    %vm441 = vweird.f32 %v435
    %vm442 = vmor %vm440, %vm441
    %v443 = vsel %vm442, %v435, %v439
    %v444 = vand.u32 2147483647, %v191
    %vm445 = vcmp.eq.f32.partialorder %v444, 8.507059e+37
    %v446 = vand.u32 %v191, 2147483648
    %v447 = vor.u32 1.1754944e-38, %v446
    %v448 = vsel %vm445, %v447, %v443
    %v449 = vmul.f32 1.0, %v448
    %v450 = vrcp.pop %v192
    %v451 = vmul.f32 %v192, %v450
    %v452 = vsub.f32 1.0, %v451
    %v453 = vmul.f32 %v450, %v452
    %v454 = vadd.f32 %v450, %v453
    %vm455 = vweird.f32 %v192
    %vm456 = vweird.f32 %v450
    %vm457 = vmor %vm455, %vm456
    %v458 = vsel %vm457, %v450, %v454
    %v459 = vand.u32 2147483647, %v192
    %vm460 = vcmp.eq.f32.partialorder %v459, 8.507059e+37
    %v461 = vand.u32 %v192, 2147483648
    %v462 = vor.u32 1.1754944e-38, %v461
    %v463 = vsel %vm460, %v462, %v458
    %v464 = vmul.f32 1.0, %v463
    %v465 = vrcp.pop %v193
    %v466 = vmul.f32 %v193, %v465
    %v467 = vsub.f32 1.0, %v466
    %v468 = vmul.f32 %v465, %v467
    %v469 = vadd.f32 %v465, %v468
    %vm470 = vweird.f32 %v193
    %vm471 = vweird.f32 %v465
    %vm472 = vmor %vm470, %vm471
    %v473 = vsel %vm472, %v465, %v469
    %v474 = vand.u32 2147483647, %v193
    %vm475 = vcmp.eq.f32.partialorder %v474, 8.507059e+37
    %v476 = vand.u32 %v193, 2147483648
    %v477 = vor.u32 1.1754944e-38, %v476
    %v478 = vsel %vm475, %v477, %v473
    %v479 = vmul.f32 1.0, %v478
    %v480 = vrcp.pop %v194
    %v481 = vmul.f32 %v194, %v480
    %v482 = vsub.f32 1.0, %v481
    %v483 = vmul.f32 %v480, %v482
    %v484 = vadd.f32 %v480, %v483
    %vm485 = vweird.f32 %v194
    %vm486 = vweird.f32 %v480
    %vm487 = vmor %vm485, %vm486
    %v488 = vsel %vm487, %v480, %v484
    %v489 = vand.u32 2147483647, %v194
    %vm490 = vcmp.eq.f32.partialorder %v489, 8.507059e+37
    %v491 = vand.u32 %v194, 2147483648
    %v492 = vor.u32 1.1754944e-38, %v491
    %v493 = vsel %vm490, %v492, %v488
    %v494 = vmul.f32 1.0, %v493
    %v495 = vlog2.pop %v209
    %v496 = vmul.f32 %v495, 0.6931472
    %v497 = vlog2.pop %v224
    %v498 = vmul.f32 %v497, 0.6931472
    %v499 = vlog2.pop %v239
    %v500 = vmul.f32 %v499, 0.6931472
    %v501 = vlog2.pop %v254
    %v502 = vmul.f32 %v501, 0.6931472
    %v503 = vlog2.pop %v269
    %v504 = vmul.f32 %v503, 0.6931472
    %v505 = vlog2.pop %v284
    %v506 = vmul.f32 %v505, 0.6931472
    %v507 = vlog2.pop %v299
    %v508 = vmul.f32 %v507, 0.6931472
    %v509 = vlog2.pop %v314
    %v510 = vmul.f32 %v509, 0.6931472
    %v511 = vlog2.pop %v329
    %v512 = vmul.f32 %v511, 0.6931472
    %v513 = vlog2.pop %v344
    %v514 = vmul.f32 %v513, 0.6931472
    %v515 = vlog2.pop %v359
    %v516 = vmul.f32 %v515, 0.6931472
    %v517 = vlog2.pop %v374
    %v518 = vmul.f32 %v517, 0.6931472
    %v519 = vlog2.pop %v389
    %v520 = vmul.f32 %v519, 0.6931472
    %v521 = vlog2.pop %v404
    %v522 = vmul.f32 %v521, 0.6931472
    %v523 = vlog2.pop %v419
    %v524 = vmul.f32 %v523, 0.6931472
    %v525 = vlog2.pop %v434
    %v526 = vmul.f32 %v525, 0.6931472
    %v527 = vlog2.pop %v449
    %v528 = vmul.f32 %v527, 0.6931472
    %v529 = vlog2.pop %v464
    %v530 = vmul.f32 %v529, 0.6931472
    %v531 = vlog2.pop %v479
    %v532 = vmul.f32 %v531, 0.6931472
    %v533 = vlog2.pop %v494
    %v534 = vmul.f32 %v533, 0.6931472
    %v535 = vmax.f32 %v496, -100.0
    %v536 = vmax.f32 %v498, -100.0
    %v537 = vmax.f32 %v500, -100.0
    %v538 = vmax.f32 %v502, -100.0
    %v539 = vmax.f32 %v504, -100.0
    %v540 = vmax.f32 %v506, -100.0
    %v541 = vmax.f32 %v508, -100.0
    %v542 = vmax.f32 %v510, -100.0
    %v543 = vmax.f32 %v512, -100.0
    %v544 = vmax.f32 %v514, -100.0
    %v545 = vmax.f32 %v516, -100.0
    %v546 = vmax.f32 %v518, -100.0
    %v547 = vmax.f32 %v520, -100.0
    %v548 = vmax.f32 %v522, -100.0
    %v549 = vmax.f32 %v524, -100.0
    %v550 = vmax.f32 %v526, -100.0
    %v551 = vmax.f32 %v528, -100.0
    %v552 = vmax.f32 %v530, -100.0
    %v553 = vmax.f32 %v532, -100.0
    %v554 = vmax.f32 %v534, -100.0
    %v555 = vsub.f32 1.0, %v209
    %v556 = vsub.f32 1.0, %v224
    %v557 = vsub.f32 1.0, %v239
    %v558 = vsub.f32 1.0, %v254
    %v559 = vsub.f32 1.0, %v269
    %v560 = vsub.f32 1.0, %v284
    %v561 = vsub.f32 1.0, %v299
    %v562 = vsub.f32 1.0, %v314
    %v563 = vsub.f32 1.0, %v329
    %v564 = vsub.f32 1.0, %v344
    %v565 = vsub.f32 1.0, %v359
    %v566 = vsub.f32 1.0, %v374
    %v567 = vsub.f32 1.0, %v389
    %v568 = vsub.f32 1.0, %v404
    %v569 = vsub.f32 1.0, %v419
    %v570 = vsub.f32 1.0, %v434
    %v571 = vsub.f32 1.0, %v449
    %v572 = vsub.f32 1.0, %v464
    %v573 = vsub.f32 1.0, %v479
    %v574 = vsub.f32 1.0, %v494
    %v575 = vlog2.pop %v555
    %v576 = vmul.f32 %v575, 0.6931472
    %v577 = vlog2.pop %v556
    %v578 = vmul.f32 %v577, 0.6931472
    %v579 = vlog2.pop %v557
    %v580 = vmul.f32 %v579, 0.6931472
    %v581 = vlog2.pop %v558
    %v582 = vmul.f32 %v581, 0.6931472
    %v583 = vlog2.pop %v559
    %v584 = vmul.f32 %v583, 0.6931472
    %v585 = vlog2.pop %v560
    %v586 = vmul.f32 %v585, 0.6931472
    %v587 = vlog2.pop %v561
    %v588 = vmul.f32 %v587, 0.6931472
    %v589 = vlog2.pop %v562
    %v590 = vmul.f32 %v589, 0.6931472
    %v591 = vlog2.pop %v563
    %v592 = vmul.f32 %v591, 0.6931472
    %v593 = vlog2.pop %v564
    %v594 = vmul.f32 %v593, 0.6931472
    %v595 = vlog2.pop %v565
    %v596 = vmul.f32 %v595, 0.6931472
    %v597 = vlog2.pop %v566
    %v598 = vmul.f32 %v597, 0.6931472
    %v599 = vlog2.pop %v567
    %v600 = vmul.f32 %v599, 0.6931472
    %v601 = vlog2.pop %v568
    %v602 = vmul.f32 %v601, 0.6931472
    %v603 = vlog2.pop %v569
    %v604 = vmul.f32 %v603, 0.6931472
    %v605 = vlog2.pop %v570
    %v606 = vmul.f32 %v605, 0.6931472
    %v607 = vlog2.pop %v571
    %v608 = vmul.f32 %v607, 0.6931472
    %v609 = vlog2.pop %v572
    %v610 = vmul.f32 %v609, 0.6931472
    %v611 = vlog2.pop %v573
    %v612 = vmul.f32 %v611, 0.6931472
    %v613 = vlog2.pop %v574
    %v614 = vmul.f32 %v613, 0.6931472
    %v615 = vmax.f32 %v576, -100.0
    %v616 = vmax.f32 %v578, -100.0
    %v617 = vmax.f32 %v580, -100.0
    %v618 = vmax.f32 %v582, -100.0
    %v619 = vmax.f32 %v584, -100.0
    %v620 = vmax.f32 %v586, -100.0
    %v621 = vmax.f32 %v588, -100.0
    %v622 = vmax.f32 %v590, -100.0
    %v623 = vmax.f32 %v592, -100.0
    %v624 = vmax.f32 %v594, -100.0
    %v625 = vmax.f32 %v596, -100.0
    %v626 = vmax.f32 %v598, -100.0
    %v627 = vmax.f32 %v600, -100.0
    %v628 = vmax.f32 %v602, -100.0
    %v629 = vmax.f32 %v604, -100.0
    %v630 = vmax.f32 %v606, -100.0
    %v631 = vmax.f32 %v608, -100.0
    %v632 = vmax.f32 %v610, -100.0
    %v633 = vmax.f32 %v612, -100.0
    %v634 = vmax.f32 %v614, -100.0
    %v635 = vmul.f32 %v95, %v535
    %v636 = vmul.f32 %v96, %v536
    %v637 = vmul.f32 %v97, %v537
    %v638 = vmul.f32 %v98, %v538
    %v639 = vmul.f32 %v99, %v539
    %v640 = vmul.f32 %v100, %v540
    %v641 = vmul.f32 %v101, %v541
    %v642 = vmul.f32 %v102, %v542
    %v643 = vmul.f32 %v103, %v543
    %v644 = vmul.f32 %v104, %v544
    %v645 = vmul.f32 %v105, %v545
    %v646 = vmul.f32 %v106, %v546
    %v647 = vmul.f32 %v107, %v547
    %v648 = vmul.f32 %v108, %v548
    %v649 = vmul.f32 %v109, %v549
    %v650 = vmul.f32 %v110, %v550
    %v651 = vmul.f32 %v111, %v551
    %v652 = vmul.f32 %v112, %v552
    %v653 = vmul.f32 %v113, %v553
    %v654 = vmul.f32 %v114, %v554
    %v655 = vsub.f32 1.0, %v95
    %v656 = vsub.f32 1.0, %v96
    %v657 = vsub.f32 1.0, %v97
    %v658 = vsub.f32 1.0, %v98
    %v659 = vsub.f32 1.0, %v99
    %v660 = vsub.f32 1.0, %v100
    %v661 = vsub.f32 1.0, %v101
    %v662 = vsub.f32 1.0, %v102
    %v663 = vsub.f32 1.0, %v103
    %v664 = vsub.f32 1.0, %v104
    %v665 = vsub.f32 1.0, %v105
    %v666 = vsub.f32 1.0, %v106
    %v667 = vsub.f32 1.0, %v107
    %v668 = vsub.f32 1.0, %v108
    %v669 = vsub.f32 1.0, %v109
    %v670 = vsub.f32 1.0, %v110
    %v671 = vsub.f32 1.0, %v111
    %v672 = vsub.f32 1.0, %v112
    %v673 = vsub.f32 1.0, %v113
    %v674 = vsub.f32 1.0, %v114
    %v675 = vmul.f32 %v655, %v615
    %v676 = vmul.f32 %v656, %v616
    %v677 = vmul.f32 %v657, %v617
    %v678 = vmul.f32 %v658, %v618
    %v679 = vmul.f32 %v659, %v619
    %v680 = vmul.f32 %v660, %v620
    %v681 = vmul.f32 %v661, %v621
    %v682 = vmul.f32 %v662, %v622
    %v683 = vmul.f32 %v663, %v623
    %v684 = vmul.f32 %v664, %v624
    %v685 = vmul.f32 %v665, %v625
    %v686 = vmul.f32 %v666, %v626
    %v687 = vmul.f32 %v667, %v627
    %v688 = vmul.f32 %v668, %v628
    %v689 = vmul.f32 %v669, %v629
    %v690 = vmul.f32 %v670, %v630
    %v691 = vmul.f32 %v671, %v631
    %v692 = vmul.f32 %v672, %v632
    %v693 = vmul.f32 %v673, %v633
    %v694 = vmul.f32 %v674, %v634
    %v695 = vadd.f32 %v635, %v675
    %v696 = vadd.f32 %v636, %v676
    %v697 = vadd.f32 %v637, %v677
    %v698 = vadd.f32 %v638, %v678
    %v699 = vadd.f32 %v639, %v679
    %v700 = vadd.f32 %v640, %v680
    %v701 = vadd.f32 %v641, %v681
    %v702 = vadd.f32 %v642, %v682
    %v703 = vadd.f32 %v643, %v683
    %v704 = vadd.f32 %v644, %v684
    %v705 = vadd.f32 %v645, %v685
    %v706 = vadd.f32 %v646, %v686
    %v707 = vadd.f32 %v647, %v687
    %v708 = vadd.f32 %v648, %v688
    %v709 = vadd.f32 %v649, %v689
    %v710 = vadd.f32 %v650, %v690
    %v711 = vadd.f32 %v651, %v691
    %v712 = vadd.f32 %v652, %v692
    %v713 = vadd.f32 %v653, %v693
    %v714 = vadd.f32 %v654, %v694
    %v715 = vsub.f32 0.0, %v695
    %v716 = vsub.f32 0.0, %v696
    %v717 = vsub.f32 0.0, %v697
    %v718 = vsub.f32 0.0, %v698
    %v719 = vsub.f32 0.0, %v699
    %v720 = vsub.f32 0.0, %v700
    %v721 = vsub.f32 0.0, %v701
    %v722 = vsub.f32 0.0, %v702
    %v723 = vsub.f32 0.0, %v703
    %v724 = vsub.f32 0.0, %v704
    %v725 = vsub.f32 0.0, %v705
    %v726 = vsub.f32 0.0, %v706
    %v727 = vsub.f32 0.0, %v707
    %v728 = vsub.f32 0.0, %v708
    %v729 = vsub.f32 0.0, %v709
    %v730 = vsub.f32 0.0, %v710
    %v731 = vsub.f32 0.0, %v711
    %v732 = vsub.f32 0.0, %v712
    %v733 = vsub.f32 0.0, %v713
    %v734 = vsub.f32 0.0, %v714
    %v735 = vsub.f32 %v209, %v95
    %v736 = vsub.f32 %v224, %v96
    %v737 = vsub.f32 %v239, %v97
    %v738 = vsub.f32 %v254, %v98
    %v739 = vsub.f32 %v269, %v99
    %v740 = vsub.f32 %v284, %v100
    %v741 = vsub.f32 %v299, %v101
    %v742 = vsub.f32 %v314, %v102
    %v743 = vsub.f32 %v329, %v103
    %v744 = vsub.f32 %v344, %v104
    %v745 = vsub.f32 %v359, %v105
    %v746 = vsub.f32 %v374, %v106
    %v747 = vsub.f32 %v389, %v107
    %v748 = vsub.f32 %v404, %v108
    %v749 = vsub.f32 %v419, %v109
    %v750 = vsub.f32 %v434, %v110
    %v751 = vsub.f32 %v449, %v111
    %v752 = vsub.f32 %v464, %v112
    %v753 = vsub.f32 %v479, %v113
    %v754 = vsub.f32 %v494, %v114
    %v755 = vand.u32 2147483647, %v735
    %v756 = vand.u32 2147483647, %v736
    %v757 = vand.u32 2147483647, %v737
    %v758 = vand.u32 2147483647, %v738
    %v759 = vand.u32 2147483647, %v739
    %v760 = vand.u32 2147483647, %v740
    %v761 = vand.u32 2147483647, %v741
    %v762 = vand.u32 2147483647, %v742
    %v763 = vand.u32 2147483647, %v743
    %v764 = vand.u32 2147483647, %v744
    %v765 = vand.u32 2147483647, %v745
    %v766 = vand.u32 2147483647, %v746
    %v767 = vand.u32 2147483647, %v747
    %v768 = vand.u32 2147483647, %v748
    %v769 = vand.u32 2147483647, %v749
    %v770 = vand.u32 2147483647, %v750
    %v771 = vand.u32 2147483647, %v751
    %v772 = vand.u32 2147483647, %v752
    %v773 = vand.u32 2147483647, %v753
    %v774 = vand.u32 2147483647, %v754
    %v775 = vlaneseq
    %v776 = vshrl.u32 %v775, 7
    %v777 = vadd.s32 %v776, 8
    %v778 = vadd.s32 %v776, 16
    %v779 = vadd.s32 %v776, 24
    %v780 = vadd.s32 %v776, 32
    %v781 = vadd.s32 %v776, 40
    %v782 = vadd.s32 %v776, 48
    %v783 = vadd.s32 %v776, 56
    %v784 = vadd.s32 %v776, 64
    %v785 = vadd.s32 %v776, 72
    %v786 = vadd.s32 %v776, 80
    %v787 = vadd.s32 %v776, 88
    %v788 = vadd.s32 %v776, 96
    %v789 = vadd.s32 %v776, 104
    %v790 = vadd.s32 %v776, 112
    %v791 = vadd.s32 %v776, 120
    %v792 = vadd.s32 %v776, 128
    %v793 = vadd.s32 %v776, 136
    %v794 = vadd.s32 %v776, 144
    %v795 = vadd.s32 %v776, 152
    %v796 = vlaneseq
    %v797 = vand.u32 %v796, 127
    %s798 = sadd.s32 0, 0
    %s799 = smul.u32 %s798, 160
    %v800 = vstv %s799
    %v801 = vadd.s32 %v800, %v776
    %v802 = vadd.s32 %v800, %v777
    %v803 = vadd.s32 %v800, %v778
    %v804 = vadd.s32 %v800, %v779
    %v805 = vadd.s32 %v800, %v780
    %v806 = vadd.s32 %v800, %v781
    %v807 = vadd.s32 %v800, %v782
    %v808 = vadd.s32 %v800, %v783
    %v809 = vadd.s32 %v800, %v784
    %v810 = vadd.s32 %v800, %v785
    %v811 = vadd.s32 %v800, %v786
    %v812 = vadd.s32 %v800, %v787
    %v813 = vadd.s32 %v800, %v788
    %v814 = vadd.s32 %v800, %v789
    %v815 = vadd.s32 %v800, %v790
    %v816 = vadd.s32 %v800, %v791
    %v817 = vadd.s32 %v800, %v792
    %v818 = vadd.s32 %v800, %v793
    %v819 = vadd.s32 %v800, %v794
    %v820 = vadd.s32 %v800, %v795
    %v821 = vmul.u32 %v801, 128
    %v822 = vmul.u32 %v802, 128
    %v823 = vmul.u32 %v803, 128
    %v824 = vmul.u32 %v804, 128
    %v825 = vmul.u32 %v805, 128
    %v826 = vmul.u32 %v806, 128
    %v827 = vmul.u32 %v807, 128
    %v828 = vmul.u32 %v808, 128
    %v829 = vmul.u32 %v809, 128
    %v830 = vmul.u32 %v810, 128
    %v831 = vmul.u32 %v811, 128
    %v832 = vmul.u32 %v812, 128
    %v833 = vmul.u32 %v813, 128
    %v834 = vmul.u32 %v814, 128
    %v835 = vmul.u32 %v815, 128
    %v836 = vmul.u32 %v816, 128
    %v837 = vmul.u32 %v817, 128
    %v838 = vmul.u32 %v818, 128
    %v839 = vmul.u32 %v819, 128
    %v840 = vmul.u32 %v820, 128
    %v841 = vadd.s32 %v821, %v797
    %v842 = vadd.s32 %v822, %v797
    %v843 = vadd.s32 %v823, %v797
    %v844 = vadd.s32 %v824, %v797
    %v845 = vadd.s32 %v825, %v797
    %v846 = vadd.s32 %v826, %v797
    %v847 = vadd.s32 %v827, %v797
    %v848 = vadd.s32 %v828, %v797
    %v849 = vadd.s32 %v829, %v797
    %v850 = vadd.s32 %v830, %v797
    %v851 = vadd.s32 %v831, %v797
    %v852 = vadd.s32 %v832, %v797
    %v853 = vadd.s32 %v833, %v797
    %v854 = vadd.s32 %v834, %v797
    %v855 = vadd.s32 %v835, %v797
    %v856 = vadd.s32 %v836, %v797
    %v857 = vadd.s32 %v837, %v797
    %v858 = vadd.s32 %v838, %v797
    %v859 = vadd.s32 %v839, %v797
    %v860 = vadd.s32 %v840, %v797
    %vm861 = vcmp.lt.s32.totalorder %v841, 20000
    %vm862 = vcmp.lt.s32.totalorder %v842, 20000
    %vm863 = vcmp.lt.s32.totalorder %v843, 20000
    %vm864 = vcmp.lt.s32.totalorder %v844, 20000
    %vm865 = vcmp.lt.s32.totalorder %v845, 20000
    %vm866 = vcmp.lt.s32.totalorder %v846, 20000
    %vm867 = vcmp.lt.s32.totalorder %v847, 20000
    %vm868 = vcmp.lt.s32.totalorder %v848, 20000
    %vm869 = vcmp.lt.s32.totalorder %v849, 20000
    %vm870 = vcmp.lt.s32.totalorder %v850, 20000
    %vm871 = vcmp.lt.s32.totalorder %v851, 20000
    %vm872 = vcmp.lt.s32.totalorder %v852, 20000
    %vm873 = vcmp.lt.s32.totalorder %v853, 20000
    %vm874 = vcmp.lt.s32.totalorder %v854, 20000
    %vm875 = vcmp.lt.s32.totalorder %v855, 20000
    %vm876 = vcmp.lt.s32.totalorder %v856, 20000
    %vm877 = vcmp.lt.s32.totalorder %v857, 20000
    %vm878 = vcmp.lt.s32.totalorder %v858, 20000
    %vm879 = vcmp.lt.s32.totalorder %v859, 20000
    %vm880 = vcmp.lt.s32.totalorder %v860, 20000
    %v881 = vmul.f32 %v755, 10.0
    %v882 = vmul.f32 %v756, 10.0
    %v883 = vmul.f32 %v757, 10.0
    %v884 = vmul.f32 %v758, 10.0
    %v885 = vmul.f32 %v759, 10.0
    %v886 = vmul.f32 %v760, 10.0
    %v887 = vmul.f32 %v761, 10.0
    %v888 = vmul.f32 %v762, 10.0
    %v889 = vmul.f32 %v763, 10.0
    %v890 = vmul.f32 %v764, 10.0
    %v891 = vmul.f32 %v765, 10.0
    %v892 = vmul.f32 %v766, 10.0
    %v893 = vmul.f32 %v767, 10.0
    %v894 = vmul.f32 %v768, 10.0
    %v895 = vmul.f32 %v769, 10.0
    %v896 = vmul.f32 %v770, 10.0
    %v897 = vmul.f32 %v771, 10.0
    %v898 = vmul.f32 %v772, 10.0
    %v899 = vmul.f32 %v773, 10.0
    %v900 = vmul.f32 %v774, 10.0
    %v901 = vcvt.f32.s32.to.zero.pseudo %v881
    %v902 = vcvt.f32.s32.to.zero.pseudo %v882
    %v903 = vcvt.f32.s32.to.zero.pseudo %v883
    %v904 = vcvt.f32.s32.to.zero.pseudo %v884
    %v905 = vcvt.f32.s32.to.zero.pseudo %v885
    %v906 = vcvt.f32.s32.to.zero.pseudo %v886
    %v907 = vcvt.f32.s32.to.zero.pseudo %v887
    %v908 = vcvt.f32.s32.to.zero.pseudo %v888
    %v909 = vcvt.f32.s32.to.zero.pseudo %v889
    %v910 = vcvt.f32.s32.to.zero.pseudo %v890
    %v911 = vcvt.f32.s32.to.zero.pseudo %v891
    %v912 = vcvt.f32.s32.to.zero.pseudo %v892
    %v913 = vcvt.f32.s32.to.zero.pseudo %v893
    %v914 = vcvt.f32.s32.to.zero.pseudo %v894
    %v915 = vcvt.f32.s32.to.zero.pseudo %v895
    %v916 = vcvt.f32.s32.to.zero.pseudo %v896
    %v917 = vcvt.f32.s32.to.zero.pseudo %v897
    %v918 = vcvt.f32.s32.to.zero.pseudo %v898
    %v919 = vcvt.f32.s32.to.zero.pseudo %v899
    %v920 = vcvt.f32.s32.to.zero.pseudo %v900
    %v921 = vsel %vm861, %v901, 10
    %v922 = vsel %vm862, %v902, 10
    %v923 = vsel %vm863, %v903, 10
    %v924 = vsel %vm864, %v904, 10
    %v925 = vsel %vm865, %v905, 10
    %v926 = vsel %vm866, %v906, 10
    %v927 = vsel %vm867, %v907, 10
    %v928 = vsel %vm868, %v908, 10
    %v929 = vsel %vm869, %v909, 10
    %v930 = vsel %vm870, %v910, 10
    %v931 = vsel %vm871, %v911, 10
    %v932 = vsel %vm872, %v912, 10
    %v933 = vsel %vm873, %v913, 10
    %v934 = vsel %vm874, %v914, 10
    %v935 = vsel %vm875, %v915, 10
    %v936 = vsel %vm876, %v916, 10
    %v937 = vsel %vm877, %v917, 10
    %v938 = vsel %vm878, %v918, 10
    %v939 = vsel %vm879, %v919, 10
    %v940 = vsel %vm880, %v920, 10
    %vm941 = vcmp.eq.s32.totalorder %v921, 0
    %vm942 = vcmp.eq.s32.totalorder %v922, 0
    %vm943 = vcmp.eq.s32.totalorder %v923, 0
    %vm944 = vcmp.eq.s32.totalorder %v924, 0
    %vm945 = vcmp.eq.s32.totalorder %v925, 0
    %vm946 = vcmp.eq.s32.totalorder %v926, 0
    %vm947 = vcmp.eq.s32.totalorder %v927, 0
    %vm948 = vcmp.eq.s32.totalorder %v928, 0
    %vm949 = vcmp.eq.s32.totalorder %v929, 0
    %vm950 = vcmp.eq.s32.totalorder %v930, 0
    %vm951 = vcmp.eq.s32.totalorder %v931, 0
    %vm952 = vcmp.eq.s32.totalorder %v932, 0
    %vm953 = vcmp.eq.s32.totalorder %v933, 0
    %vm954 = vcmp.eq.s32.totalorder %v934, 0
    %vm955 = vcmp.eq.s32.totalorder %v935, 0
    %vm956 = vcmp.eq.s32.totalorder %v936, 0
    %vm957 = vcmp.eq.s32.totalorder %v937, 0
    %vm958 = vcmp.eq.s32.totalorder %v938, 0
    %vm959 = vcmp.eq.s32.totalorder %v939, 0
    %vm960 = vcmp.eq.s32.totalorder %v940, 0
    %v961 = vsel %vm941, 1, 0
    %v962 = vsel %vm942, 1, 0
    %v963 = vsel %vm943, 1, 0
    %v964 = vsel %vm944, 1, 0
    %v965 = vsel %vm945, 1, 0
    %v966 = vsel %vm946, 1, 0
    %v967 = vsel %vm947, 1, 0
    %v968 = vsel %vm948, 1, 0
    %v969 = vsel %vm949, 1, 0
    %v970 = vsel %vm950, 1, 0
    %v971 = vsel %vm951, 1, 0
    %v972 = vsel %vm952, 1, 0
    %v973 = vsel %vm953, 1, 0
    %v974 = vsel %vm954, 1, 0
    %v975 = vsel %vm955, 1, 0
    %v976 = vsel %vm956, 1, 0
    %v977 = vsel %vm957, 1, 0
    %v978 = vsel %vm958, 1, 0
    %v979 = vsel %vm959, 1, 0
    %v980 = vsel %vm960, 1, 0
    %v981 = vcvt.s32.f32 %v961
    %v982 = vcvt.s32.f32 %v962
    %v983 = vcvt.s32.f32 %v963
    %v984 = vcvt.s32.f32 %v964
    %v985 = vcvt.s32.f32 %v965
    %v986 = vcvt.s32.f32 %v966
    %v987 = vcvt.s32.f32 %v967
    %v988 = vcvt.s32.f32 %v968
    %v989 = vcvt.s32.f32 %v969
    %v990 = vcvt.s32.f32 %v970
    %v991 = vcvt.s32.f32 %v971
    %v992 = vcvt.s32.f32 %v972
    %v993 = vcvt.s32.f32 %v973
    %v994 = vcvt.s32.f32 %v974
    %v995 = vcvt.s32.f32 %v975
    %v996 = vcvt.s32.f32 %v976
    %v997 = vcvt.s32.f32 %v977
    %v998 = vcvt.s32.f32 %v978
    %v999 = vcvt.s32.f32 %v979
    %v1000 = vcvt.s32.f32 %v980
    %v1001 = vadd.f32 %v981, %v982
    %v1002 = vadd.f32 %v1001, %v983
    %v1003 = vadd.f32 %v1002, %v984
    %v1004 = vadd.f32 %v1003, %v985
    %v1005 = vadd.f32 %v1004, %v986
    %v1006 = vadd.f32 %v1005, %v987
    %v1007 = vadd.f32 %v1006, %v988
    %v1008 = vadd.f32 %v1007, %v989
    %v1009 = vadd.f32 %v1008, %v990
    %v1010 = vadd.f32 %v1009, %v991
    %v1011 = vadd.f32 %v1010, %v992
    %v1012 = vadd.f32 %v1011, %v993
    %v1013 = vadd.f32 %v1012, %v994
    %v1014 = vadd.f32 %v1013, %v995
    %v1015 = vadd.f32 %v1014, %v996
    %v1016 = vadd.f32 %v1015, %v997
    %v1017 = vadd.f32 %v1016, %v998
    %v1018 = vadd.f32 %v1017, %v999
    %v1019 = vadd.f32 %v1018, %v1000
    %v1020 = vrot.slane %v1019, 4
    %v1021 = vadd.f32 %v1019, %v1020
    %v1022 = vrot.slane %v1021, 2
    %v1023 = vadd.f32 %v1021, %v1022
    %v1024 = vrot.slane %v1023, 1
    %v1025 = vadd.f32 %v1023, %v1024
    %v1026 = vsel %vm941, %v715, 0.0
    %v1027 = vsel %vm942, %v716, 0.0
    %v1028 = vsel %vm943, %v717, 0.0
    %v1029 = vsel %vm944, %v718, 0.0
    %v1030 = vsel %vm945, %v719, 0.0
    %v1031 = vsel %vm946, %v720, 0.0
    %v1032 = vsel %vm947, %v721, 0.0
    %v1033 = vsel %vm948, %v722, 0.0
    %v1034 = vsel %vm949, %v723, 0.0
    %v1035 = vsel %vm950, %v724, 0.0
    %v1036 = vsel %vm951, %v725, 0.0
    %v1037 = vsel %vm952, %v726, 0.0
    %v1038 = vsel %vm953, %v727, 0.0
    %v1039 = vsel %vm954, %v728, 0.0
    %v1040 = vsel %vm955, %v729, 0.0
    %v1041 = vsel %vm956, %v730, 0.0
    %v1042 = vsel %vm957, %v731, 0.0
    %v1043 = vsel %vm958, %v732, 0.0
    %v1044 = vsel %vm959, %v733, 0.0
    %v1045 = vsel %vm960, %v734, 0.0
    %v1046 = vadd.f32 %v1026, %v1027
    %v1047 = vadd.f32 %v1046, %v1028
    %v1048 = vadd.f32 %v1047, %v1029
    %v1049 = vadd.f32 %v1048, %v1030
    %v1050 = vadd.f32 %v1049, %v1031
    %v1051 = vadd.f32 %v1050, %v1032
    %v1052 = vadd.f32 %v1051, %v1033
    %v1053 = vadd.f32 %v1052, %v1034
    %v1054 = vadd.f32 %v1053, %v1035
    %v1055 = vadd.f32 %v1054, %v1036
    %v1056 = vadd.f32 %v1055, %v1037
    %v1057 = vadd.f32 %v1056, %v1038
    %v1058 = vadd.f32 %v1057, %v1039
    %v1059 = vadd.f32 %v1058, %v1040
    %v1060 = vadd.f32 %v1059, %v1041
    %v1061 = vadd.f32 %v1060, %v1042
    %v1062 = vadd.f32 %v1061, %v1043
    %v1063 = vadd.f32 %v1062, %v1044
    %v1064 = vadd.f32 %v1063, %v1045
    %v1065 = vrot.slane %v1064, 4
    %v1066 = vadd.f32 %v1064, %v1065
    %v1067 = vrot.slane %v1066, 2
    %v1068 = vadd.f32 %v1066, %v1067
    %v1069 = vrot.slane %v1068, 1
    %v1070 = vadd.f32 %v1068, %v1069
    %v1071 = vld [vmem:[#allocation7] sm:$0x1]
    %v1072 = vadd.f32 %v1071, %v1025
    %1073 = vst [vmem:[#allocation7] sm:$0x1] %v1072
    %v1074 = vld [vmem:[#allocation8] sm:$0x1]
    %v1075 = vadd.f32 %v1074, %v1070
    %1076 = vst [vmem:[#allocation8] sm:$0x1] %v1075
    %vm1077 = vcmp.eq.s32.totalorder %v921, 1
    %vm1078 = vcmp.eq.s32.totalorder %v922, 1
    %vm1079 = vcmp.eq.s32.totalorder %v923, 1
    %vm1080 = vcmp.eq.s32.totalorder %v924, 1
    %vm1081 = vcmp.eq.s32.totalorder %v925, 1
    %vm1082 = vcmp.eq.s32.totalorder %v926, 1
    %vm1083 = vcmp.eq.s32.totalorder %v927, 1
    %vm1084 = vcmp.eq.s32.totalorder %v928, 1
    %vm1085 = vcmp.eq.s32.totalorder %v929, 1
    %vm1086 = vcmp.eq.s32.totalorder %v930, 1
    %vm1087 = vcmp.eq.s32.totalorder %v931, 1
    %vm1088 = vcmp.eq.s32.totalorder %v932, 1
    %vm1089 = vcmp.eq.s32.totalorder %v933, 1
    %vm1090 = vcmp.eq.s32.totalorder %v934, 1
    %vm1091 = vcmp.eq.s32.totalorder %v935, 1
    %vm1092 = vcmp.eq.s32.totalorder %v936, 1
    %vm1093 = vcmp.eq.s32.totalorder %v937, 1
    %vm1094 = vcmp.eq.s32.totalorder %v938, 1
    %vm1095 = vcmp.eq.s32.totalorder %v939, 1
    %vm1096 = vcmp.eq.s32.totalorder %v940, 1
    %v1097 = vsel %vm1077, 1, 0
    %v1098 = vsel %vm1078, 1, 0
    %v1099 = vsel %vm1079, 1, 0
    %v1100 = vsel %vm1080, 1, 0
    %v1101 = vsel %vm1081, 1, 0
    %v1102 = vsel %vm1082, 1, 0
    %v1103 = vsel %vm1083, 1, 0
    %v1104 = vsel %vm1084, 1, 0
    %v1105 = vsel %vm1085, 1, 0
    %v1106 = vsel %vm1086, 1, 0
    %v1107 = vsel %vm1087, 1, 0
    %v1108 = vsel %vm1088, 1, 0
    %v1109 = vsel %vm1089, 1, 0
    %v1110 = vsel %vm1090, 1, 0
    %v1111 = vsel %vm1091, 1, 0
    %v1112 = vsel %vm1092, 1, 0
    %v1113 = vsel %vm1093, 1, 0
    %v1114 = vsel %vm1094, 1, 0
    %v1115 = vsel %vm1095, 1, 0
    %v1116 = vsel %vm1096, 1, 0
    %v1117 = vcvt.s32.f32 %v1097
    %v1118 = vcvt.s32.f32 %v1098
    %v1119 = vcvt.s32.f32 %v1099
    %v1120 = vcvt.s32.f32 %v1100
    %v1121 = vcvt.s32.f32 %v1101
    %v1122 = vcvt.s32.f32 %v1102
    %v1123 = vcvt.s32.f32 %v1103
    %v1124 = vcvt.s32.f32 %v1104
    %v1125 = vcvt.s32.f32 %v1105
    %v1126 = vcvt.s32.f32 %v1106
    %v1127 = vcvt.s32.f32 %v1107
    %v1128 = vcvt.s32.f32 %v1108
    %v1129 = vcvt.s32.f32 %v1109
    %v1130 = vcvt.s32.f32 %v1110
    %v1131 = vcvt.s32.f32 %v1111
    %v1132 = vcvt.s32.f32 %v1112
    %v1133 = vcvt.s32.f32 %v1113
    %v1134 = vcvt.s32.f32 %v1114
    %v1135 = vcvt.s32.f32 %v1115
    %v1136 = vcvt.s32.f32 %v1116
    %v1137 = vadd.f32 %v1117, %v1118
    %v1138 = vadd.f32 %v1137, %v1119
    %v1139 = vadd.f32 %v1138, %v1120
    %v1140 = vadd.f32 %v1139, %v1121
    %v1141 = vadd.f32 %v1140, %v1122
    %v1142 = vadd.f32 %v1141, %v1123
    %v1143 = vadd.f32 %v1142, %v1124
    %v1144 = vadd.f32 %v1143, %v1125
    %v1145 = vadd.f32 %v1144, %v1126
    %v1146 = vadd.f32 %v1145, %v1127
    %v1147 = vadd.f32 %v1146, %v1128
    %v1148 = vadd.f32 %v1147, %v1129
    %v1149 = vadd.f32 %v1148, %v1130
    %v1150 = vadd.f32 %v1149, %v1131
    %v1151 = vadd.f32 %v1150, %v1132
    %v1152 = vadd.f32 %v1151, %v1133
    %v1153 = vadd.f32 %v1152, %v1134
    %v1154 = vadd.f32 %v1153, %v1135
    %v1155 = vadd.f32 %v1154, %v1136
    %v1156 = vrot.slane %v1155, 4
    %v1157 = vadd.f32 %v1155, %v1156
    %v1158 = vrot.slane %v1157, 2
    %v1159 = vadd.f32 %v1157, %v1158
    %v1160 = vrot.slane %v1159, 1
    %v1161 = vadd.f32 %v1159, %v1160
    %v1162 = vsel %vm1077, %v715, 0.0
    %v1163 = vsel %vm1078, %v716, 0.0
    %v1164 = vsel %vm1079, %v717, 0.0
    %v1165 = vsel %vm1080, %v718, 0.0
    %v1166 = vsel %vm1081, %v719, 0.0
    %v1167 = vsel %vm1082, %v720, 0.0
    %v1168 = vsel %vm1083, %v721, 0.0
    %v1169 = vsel %vm1084, %v722, 0.0
    %v1170 = vsel %vm1085, %v723, 0.0
    %v1171 = vsel %vm1086, %v724, 0.0
    %v1172 = vsel %vm1087, %v725, 0.0
    %v1173 = vsel %vm1088, %v726, 0.0
    %v1174 = vsel %vm1089, %v727, 0.0
    %v1175 = vsel %vm1090, %v728, 0.0
    %v1176 = vsel %vm1091, %v729, 0.0
    %v1177 = vsel %vm1092, %v730, 0.0
    %v1178 = vsel %vm1093, %v731, 0.0
    %v1179 = vsel %vm1094, %v732, 0.0
    %v1180 = vsel %vm1095, %v733, 0.0
    %v1181 = vsel %vm1096, %v734, 0.0
    %v1182 = vadd.f32 %v1162, %v1163
    %v1183 = vadd.f32 %v1182, %v1164
    %v1184 = vadd.f32 %v1183, %v1165
    %v1185 = vadd.f32 %v1184, %v1166
    %v1186 = vadd.f32 %v1185, %v1167
    %v1187 = vadd.f32 %v1186, %v1168
    %v1188 = vadd.f32 %v1187, %v1169
    %v1189 = vadd.f32 %v1188, %v1170
    %v1190 = vadd.f32 %v1189, %v1171
    %v1191 = vadd.f32 %v1190, %v1172
    %v1192 = vadd.f32 %v1191, %v1173
    %v1193 = vadd.f32 %v1192, %v1174
    %v1194 = vadd.f32 %v1193, %v1175
    %v1195 = vadd.f32 %v1194, %v1176
    %v1196 = vadd.f32 %v1195, %v1177
    %v1197 = vadd.f32 %v1196, %v1178
    %v1198 = vadd.f32 %v1197, %v1179
    %v1199 = vadd.f32 %v1198, %v1180
    %v1200 = vadd.f32 %v1199, %v1181
    %v1201 = vrot.slane %v1200, 4
    %v1202 = vadd.f32 %v1200, %v1201
    %v1203 = vrot.slane %v1202, 2
    %v1204 = vadd.f32 %v1202, %v1203
    %v1205 = vrot.slane %v1204, 1
    %v1206 = vadd.f32 %v1204, %v1205
    %v1207 = vld [vmem:[#allocation7 + $0x1] sm:$0x1]
    %v1208 = vadd.f32 %v1207, %v1161
    %1209 = vst [vmem:[#allocation7 + $0x1] sm:$0x1] %v1208
    %v1210 = vld [vmem:[#allocation8 + $0x1] sm:$0x1]
    %v1211 = vadd.f32 %v1210, %v1206
    %1212 = vst [vmem:[#allocation8 + $0x1] sm:$0x1] %v1211
    %vm1213 = vcmp.eq.s32.totalorder %v921, 2
    %vm1214 = vcmp.eq.s32.totalorder %v922, 2
    %vm1215 = vcmp.eq.s32.totalorder %v923, 2
    %vm1216 = vcmp.eq.s32.totalorder %v924, 2
    %vm1217 = vcmp.eq.s32.totalorder %v925, 2
    %vm1218 = vcmp.eq.s32.totalorder %v926, 2
    %vm1219 = vcmp.eq.s32.totalorder %v927, 2
    %vm1220 = vcmp.eq.s32.totalorder %v928, 2
    %vm1221 = vcmp.eq.s32.totalorder %v929, 2
    %vm1222 = vcmp.eq.s32.totalorder %v930, 2
    %vm1223 = vcmp.eq.s32.totalorder %v931, 2
    %vm1224 = vcmp.eq.s32.totalorder %v932, 2
    %vm1225 = vcmp.eq.s32.totalorder %v933, 2
    %vm1226 = vcmp.eq.s32.totalorder %v934, 2
    %vm1227 = vcmp.eq.s32.totalorder %v935, 2
    %vm1228 = vcmp.eq.s32.totalorder %v936, 2
    %vm1229 = vcmp.eq.s32.totalorder %v937, 2
    %vm1230 = vcmp.eq.s32.totalorder %v938, 2
    %vm1231 = vcmp.eq.s32.totalorder %v939, 2
    %vm1232 = vcmp.eq.s32.totalorder %v940, 2
    %v1233 = vsel %vm1213, 1, 0
    %v1234 = vsel %vm1214, 1, 0
    %v1235 = vsel %vm1215, 1, 0
    %v1236 = vsel %vm1216, 1, 0
    %v1237 = vsel %vm1217, 1, 0
    %v1238 = vsel %vm1218, 1, 0
    %v1239 = vsel %vm1219, 1, 0
    %v1240 = vsel %vm1220, 1, 0
    %v1241 = vsel %vm1221, 1, 0
    %v1242 = vsel %vm1222, 1, 0
    %v1243 = vsel %vm1223, 1, 0
    %v1244 = vsel %vm1224, 1, 0
    %v1245 = vsel %vm1225, 1, 0
    %v1246 = vsel %vm1226, 1, 0
    %v1247 = vsel %vm1227, 1, 0
    %v1248 = vsel %vm1228, 1, 0
    %v1249 = vsel %vm1229, 1, 0
    %v1250 = vsel %vm1230, 1, 0
    %v1251 = vsel %vm1231, 1, 0
    %v1252 = vsel %vm1232, 1, 0
    %v1253 = vcvt.s32.f32 %v1233
    %v1254 = vcvt.s32.f32 %v1234
    %v1255 = vcvt.s32.f32 %v1235
    %v1256 = vcvt.s32.f32 %v1236
    %v1257 = vcvt.s32.f32 %v1237
    %v1258 = vcvt.s32.f32 %v1238
    %v1259 = vcvt.s32.f32 %v1239
    %v1260 = vcvt.s32.f32 %v1240
    %v1261 = vcvt.s32.f32 %v1241
    %v1262 = vcvt.s32.f32 %v1242
    %v1263 = vcvt.s32.f32 %v1243
    %v1264 = vcvt.s32.f32 %v1244
    %v1265 = vcvt.s32.f32 %v1245
    %v1266 = vcvt.s32.f32 %v1246
    %v1267 = vcvt.s32.f32 %v1247
    %v1268 = vcvt.s32.f32 %v1248
    %v1269 = vcvt.s32.f32 %v1249
    %v1270 = vcvt.s32.f32 %v1250
    %v1271 = vcvt.s32.f32 %v1251
    %v1272 = vcvt.s32.f32 %v1252
    %v1273 = vadd.f32 %v1253, %v1254
    %v1274 = vadd.f32 %v1273, %v1255
    %v1275 = vadd.f32 %v1274, %v1256
    %v1276 = vadd.f32 %v1275, %v1257
    %v1277 = vadd.f32 %v1276, %v1258
    %v1278 = vadd.f32 %v1277, %v1259
    %v1279 = vadd.f32 %v1278, %v1260
    %v1280 = vadd.f32 %v1279, %v1261
    %v1281 = vadd.f32 %v1280, %v1262
    %v1282 = vadd.f32 %v1281, %v1263
    %v1283 = vadd.f32 %v1282, %v1264
    %v1284 = vadd.f32 %v1283, %v1265
    %v1285 = vadd.f32 %v1284, %v1266
    %v1286 = vadd.f32 %v1285, %v1267
    %v1287 = vadd.f32 %v1286, %v1268
    %v1288 = vadd.f32 %v1287, %v1269
    %v1289 = vadd.f32 %v1288, %v1270
    %v1290 = vadd.f32 %v1289, %v1271
    %v1291 = vadd.f32 %v1290, %v1272
    %v1292 = vrot.slane %v1291, 4
    %v1293 = vadd.f32 %v1291, %v1292
    %v1294 = vrot.slane %v1293, 2
    %v1295 = vadd.f32 %v1293, %v1294
    %v1296 = vrot.slane %v1295, 1
    %v1297 = vadd.f32 %v1295, %v1296
    %v1298 = vsel %vm1213, %v715, 0.0
    %v1299 = vsel %vm1214, %v716, 0.0
    %v1300 = vsel %vm1215, %v717, 0.0
    %v1301 = vsel %vm1216, %v718, 0.0
    %v1302 = vsel %vm1217, %v719, 0.0
    %v1303 = vsel %vm1218, %v720, 0.0
    %v1304 = vsel %vm1219, %v721, 0.0
    %v1305 = vsel %vm1220, %v722, 0.0
    %v1306 = vsel %vm1221, %v723, 0.0
    %v1307 = vsel %vm1222, %v724, 0.0
    %v1308 = vsel %vm1223, %v725, 0.0
    %v1309 = vsel %vm1224, %v726, 0.0
    %v1310 = vsel %vm1225, %v727, 0.0
    %v1311 = vsel %vm1226, %v728, 0.0
    %v1312 = vsel %vm1227, %v729, 0.0
    %v1313 = vsel %vm1228, %v730, 0.0
    %v1314 = vsel %vm1229, %v731, 0.0
    %v1315 = vsel %vm1230, %v732, 0.0
    %v1316 = vsel %vm1231, %v733, 0.0
    %v1317 = vsel %vm1232, %v734, 0.0
    %v1318 = vadd.f32 %v1298, %v1299
    %v1319 = vadd.f32 %v1318, %v1300
    %v1320 = vadd.f32 %v1319, %v1301
    %v1321 = vadd.f32 %v1320, %v1302
    %v1322 = vadd.f32 %v1321, %v1303
    %v1323 = vadd.f32 %v1322, %v1304
    %v1324 = vadd.f32 %v1323, %v1305
    %v1325 = vadd.f32 %v1324, %v1306
    %v1326 = vadd.f32 %v1325, %v1307
    %v1327 = vadd.f32 %v1326, %v1308
    %v1328 = vadd.f32 %v1327, %v1309
    %v1329 = vadd.f32 %v1328, %v1310
    %v1330 = vadd.f32 %v1329, %v1311
    %v1331 = vadd.f32 %v1330, %v1312
    %v1332 = vadd.f32 %v1331, %v1313
    %v1333 = vadd.f32 %v1332, %v1314
    %v1334 = vadd.f32 %v1333, %v1315
    %v1335 = vadd.f32 %v1334, %v1316
    %v1336 = vadd.f32 %v1335, %v1317
    %v1337 = vrot.slane %v1336, 4
    %v1338 = vadd.f32 %v1336, %v1337
    %v1339 = vrot.slane %v1338, 2
    %v1340 = vadd.f32 %v1338, %v1339
    %v1341 = vrot.slane %v1340, 1
    %v1342 = vadd.f32 %v1340, %v1341
    %v1343 = vld [vmem:[#allocation7 + $0x2] sm:$0x1]
    %v1344 = vadd.f32 %v1343, %v1297
    %1345 = vst [vmem:[#allocation7 + $0x2] sm:$0x1] %v1344
    %v1346 = vld [vmem:[#allocation8 + $0x2] sm:$0x1]
    %v1347 = vadd.f32 %v1346, %v1342
    %1348 = vst [vmem:[#allocation8 + $0x2] sm:$0x1] %v1347
    %vm1349 = vcmp.eq.s32.totalorder %v921, 3
    %vm1350 = vcmp.eq.s32.totalorder %v922, 3
    %vm1351 = vcmp.eq.s32.totalorder %v923, 3
    %vm1352 = vcmp.eq.s32.totalorder %v924, 3
    %vm1353 = vcmp.eq.s32.totalorder %v925, 3
    %vm1354 = vcmp.eq.s32.totalorder %v926, 3
    %vm1355 = vcmp.eq.s32.totalorder %v927, 3
    %vm1356 = vcmp.eq.s32.totalorder %v928, 3
    %vm1357 = vcmp.eq.s32.totalorder %v929, 3
    %vm1358 = vcmp.eq.s32.totalorder %v930, 3
    %vm1359 = vcmp.eq.s32.totalorder %v931, 3
    %vm1360 = vcmp.eq.s32.totalorder %v932, 3
    %vm1361 = vcmp.eq.s32.totalorder %v933, 3
    %vm1362 = vcmp.eq.s32.totalorder %v934, 3
    %vm1363 = vcmp.eq.s32.totalorder %v935, 3
    %vm1364 = vcmp.eq.s32.totalorder %v936, 3
    %vm1365 = vcmp.eq.s32.totalorder %v937, 3
    %vm1366 = vcmp.eq.s32.totalorder %v938, 3
    %vm1367 = vcmp.eq.s32.totalorder %v939, 3
    %vm1368 = vcmp.eq.s32.totalorder %v940, 3
    %v1369 = vsel %vm1349, 1, 0
    %v1370 = vsel %vm1350, 1, 0
    %v1371 = vsel %vm1351, 1, 0
    %v1372 = vsel %vm1352, 1, 0
    %v1373 = vsel %vm1353, 1, 0
    %v1374 = vsel %vm1354, 1, 0
    %v1375 = vsel %vm1355, 1, 0
    %v1376 = vsel %vm1356, 1, 0
    %v1377 = vsel %vm1357, 1, 0
    %v1378 = vsel %vm1358, 1, 0
    %v1379 = vsel %vm1359, 1, 0
    %v1380 = vsel %vm1360, 1, 0
    %v1381 = vsel %vm1361, 1, 0
    %v1382 = vsel %vm1362, 1, 0
    %v1383 = vsel %vm1363, 1, 0
    %v1384 = vsel %vm1364, 1, 0
    %v1385 = vsel %vm1365, 1, 0
    %v1386 = vsel %vm1366, 1, 0
    %v1387 = vsel %vm1367, 1, 0
    %v1388 = vsel %vm1368, 1, 0
    %v1389 = vcvt.s32.f32 %v1369
    %v1390 = vcvt.s32.f32 %v1370
    %v1391 = vcvt.s32.f32 %v1371
    %v1392 = vcvt.s32.f32 %v1372
    %v1393 = vcvt.s32.f32 %v1373
    %v1394 = vcvt.s32.f32 %v1374
    %v1395 = vcvt.s32.f32 %v1375
    %v1396 = vcvt.s32.f32 %v1376
    %v1397 = vcvt.s32.f32 %v1377
    %v1398 = vcvt.s32.f32 %v1378
    %v1399 = vcvt.s32.f32 %v1379
    %v1400 = vcvt.s32.f32 %v1380
    %v1401 = vcvt.s32.f32 %v1381
    %v1402 = vcvt.s32.f32 %v1382
    %v1403 = vcvt.s32.f32 %v1383
    %v1404 = vcvt.s32.f32 %v1384
    %v1405 = vcvt.s32.f32 %v1385
    %v1406 = vcvt.s32.f32 %v1386
    %v1407 = vcvt.s32.f32 %v1387
    %v1408 = vcvt.s32.f32 %v1388
    %v1409 = vadd.f32 %v1389, %v1390
    %v1410 = vadd.f32 %v1409, %v1391
    %v1411 = vadd.f32 %v1410, %v1392
    %v1412 = vadd.f32 %v1411, %v1393
    %v1413 = vadd.f32 %v1412, %v1394
    %v1414 = vadd.f32 %v1413, %v1395
    %v1415 = vadd.f32 %v1414, %v1396
    %v1416 = vadd.f32 %v1415, %v1397
    %v1417 = vadd.f32 %v1416, %v1398
    %v1418 = vadd.f32 %v1417, %v1399
    %v1419 = vadd.f32 %v1418, %v1400
    %v1420 = vadd.f32 %v1419, %v1401
    %v1421 = vadd.f32 %v1420, %v1402
    %v1422 = vadd.f32 %v1421, %v1403
    %v1423 = vadd.f32 %v1422, %v1404
    %v1424 = vadd.f32 %v1423, %v1405
    %v1425 = vadd.f32 %v1424, %v1406
    %v1426 = vadd.f32 %v1425, %v1407
    %v1427 = vadd.f32 %v1426, %v1408
    %v1428 = vrot.slane %v1427, 4
    %v1429 = vadd.f32 %v1427, %v1428
    %v1430 = vrot.slane %v1429, 2
    %v1431 = vadd.f32 %v1429, %v1430
    %v1432 = vrot.slane %v1431, 1
    %v1433 = vadd.f32 %v1431, %v1432
    %v1434 = vsel %vm1349, %v715, 0.0
    %v1435 = vsel %vm1350, %v716, 0.0
    %v1436 = vsel %vm1351, %v717, 0.0
    %v1437 = vsel %vm1352, %v718, 0.0
    %v1438 = vsel %vm1353, %v719, 0.0
    %v1439 = vsel %vm1354, %v720, 0.0
    %v1440 = vsel %vm1355, %v721, 0.0
    %v1441 = vsel %vm1356, %v722, 0.0
    %v1442 = vsel %vm1357, %v723, 0.0
    %v1443 = vsel %vm1358, %v724, 0.0
    %v1444 = vsel %vm1359, %v725, 0.0
    %v1445 = vsel %vm1360, %v726, 0.0
    %v1446 = vsel %vm1361, %v727, 0.0
    %v1447 = vsel %vm1362, %v728, 0.0
    %v1448 = vsel %vm1363, %v729, 0.0
    %v1449 = vsel %vm1364, %v730, 0.0
    %v1450 = vsel %vm1365, %v731, 0.0
    %v1451 = vsel %vm1366, %v732, 0.0
    %v1452 = vsel %vm1367, %v733, 0.0
    %v1453 = vsel %vm1368, %v734, 0.0
    %v1454 = vadd.f32 %v1434, %v1435
    %v1455 = vadd.f32 %v1454, %v1436
    %v1456 = vadd.f32 %v1455, %v1437
    %v1457 = vadd.f32 %v1456, %v1438
    %v1458 = vadd.f32 %v1457, %v1439
    %v1459 = vadd.f32 %v1458, %v1440
    %v1460 = vadd.f32 %v1459, %v1441
    %v1461 = vadd.f32 %v1460, %v1442
    %v1462 = vadd.f32 %v1461, %v1443
    %v1463 = vadd.f32 %v1462, %v1444
    %v1464 = vadd.f32 %v1463, %v1445
    %v1465 = vadd.f32 %v1464, %v1446
    %v1466 = vadd.f32 %v1465, %v1447
    %v1467 = vadd.f32 %v1466, %v1448
    %v1468 = vadd.f32 %v1467, %v1449
    %v1469 = vadd.f32 %v1468, %v1450
    %v1470 = vadd.f32 %v1469, %v1451
    %v1471 = vadd.f32 %v1470, %v1452
    %v1472 = vadd.f32 %v1471, %v1453
    %v1473 = vrot.slane %v1472, 4
    %v1474 = vadd.f32 %v1472, %v1473
    %v1475 = vrot.slane %v1474, 2
    %v1476 = vadd.f32 %v1474, %v1475
    %v1477 = vrot.slane %v1476, 1
    %v1478 = vadd.f32 %v1476, %v1477
    %v1479 = vld [vmem:[#allocation7 + $0x3] sm:$0x1]
    %v1480 = vadd.f32 %v1479, %v1433
    %1481 = vst [vmem:[#allocation7 + $0x3] sm:$0x1] %v1480
    %v1482 = vld [vmem:[#allocation8 + $0x3] sm:$0x1]
    %v1483 = vadd.f32 %v1482, %v1478
    %1484 = vst [vmem:[#allocation8 + $0x3] sm:$0x1] %v1483
    %vm1485 = vcmp.eq.s32.totalorder %v921, 4
    %vm1486 = vcmp.eq.s32.totalorder %v922, 4
    %vm1487 = vcmp.eq.s32.totalorder %v923, 4
    %vm1488 = vcmp.eq.s32.totalorder %v924, 4
    %vm1489 = vcmp.eq.s32.totalorder %v925, 4
    %vm1490 = vcmp.eq.s32.totalorder %v926, 4
    %vm1491 = vcmp.eq.s32.totalorder %v927, 4
    %vm1492 = vcmp.eq.s32.totalorder %v928, 4
    %vm1493 = vcmp.eq.s32.totalorder %v929, 4
    %vm1494 = vcmp.eq.s32.totalorder %v930, 4
    %vm1495 = vcmp.eq.s32.totalorder %v931, 4
    %vm1496 = vcmp.eq.s32.totalorder %v932, 4
    %vm1497 = vcmp.eq.s32.totalorder %v933, 4
    %vm1498 = vcmp.eq.s32.totalorder %v934, 4
    %vm1499 = vcmp.eq.s32.totalorder %v935, 4
    %vm1500 = vcmp.eq.s32.totalorder %v936, 4
    %vm1501 = vcmp.eq.s32.totalorder %v937, 4
    %vm1502 = vcmp.eq.s32.totalorder %v938, 4
    %vm1503 = vcmp.eq.s32.totalorder %v939, 4
    %vm1504 = vcmp.eq.s32.totalorder %v940, 4
    %v1505 = vsel %vm1485, 1, 0
    %v1506 = vsel %vm1486, 1, 0
    %v1507 = vsel %vm1487, 1, 0
    %v1508 = vsel %vm1488, 1, 0
    %v1509 = vsel %vm1489, 1, 0
    %v1510 = vsel %vm1490, 1, 0
    %v1511 = vsel %vm1491, 1, 0
    %v1512 = vsel %vm1492, 1, 0
    %v1513 = vsel %vm1493, 1, 0
    %v1514 = vsel %vm1494, 1, 0
    %v1515 = vsel %vm1495, 1, 0
    %v1516 = vsel %vm1496, 1, 0
    %v1517 = vsel %vm1497, 1, 0
    %v1518 = vsel %vm1498, 1, 0
    %v1519 = vsel %vm1499, 1, 0
    %v1520 = vsel %vm1500, 1, 0
    %v1521 = vsel %vm1501, 1, 0
    %v1522 = vsel %vm1502, 1, 0
    %v1523 = vsel %vm1503, 1, 0
    %v1524 = vsel %vm1504, 1, 0
    %v1525 = vcvt.s32.f32 %v1505
    %v1526 = vcvt.s32.f32 %v1506
    %v1527 = vcvt.s32.f32 %v1507
    %v1528 = vcvt.s32.f32 %v1508
    %v1529 = vcvt.s32.f32 %v1509
    %v1530 = vcvt.s32.f32 %v1510
    %v1531 = vcvt.s32.f32 %v1511
    %v1532 = vcvt.s32.f32 %v1512
    %v1533 = vcvt.s32.f32 %v1513
    %v1534 = vcvt.s32.f32 %v1514
    %v1535 = vcvt.s32.f32 %v1515
    %v1536 = vcvt.s32.f32 %v1516
    %v1537 = vcvt.s32.f32 %v1517
    %v1538 = vcvt.s32.f32 %v1518
    %v1539 = vcvt.s32.f32 %v1519
    %v1540 = vcvt.s32.f32 %v1520
    %v1541 = vcvt.s32.f32 %v1521
    %v1542 = vcvt.s32.f32 %v1522
    %v1543 = vcvt.s32.f32 %v1523
    %v1544 = vcvt.s32.f32 %v1524
    %v1545 = vadd.f32 %v1525, %v1526
    %v1546 = vadd.f32 %v1545, %v1527
    %v1547 = vadd.f32 %v1546, %v1528
    %v1548 = vadd.f32 %v1547, %v1529
    %v1549 = vadd.f32 %v1548, %v1530
    %v1550 = vadd.f32 %v1549, %v1531
    %v1551 = vadd.f32 %v1550, %v1532
    %v1552 = vadd.f32 %v1551, %v1533
    %v1553 = vadd.f32 %v1552, %v1534
    %v1554 = vadd.f32 %v1553, %v1535
    %v1555 = vadd.f32 %v1554, %v1536
    %v1556 = vadd.f32 %v1555, %v1537
    %v1557 = vadd.f32 %v1556, %v1538
    %v1558 = vadd.f32 %v1557, %v1539
    %v1559 = vadd.f32 %v1558, %v1540
    %v1560 = vadd.f32 %v1559, %v1541
    %v1561 = vadd.f32 %v1560, %v1542
    %v1562 = vadd.f32 %v1561, %v1543
    %v1563 = vadd.f32 %v1562, %v1544
    %v1564 = vrot.slane %v1563, 4
    %v1565 = vadd.f32 %v1563, %v1564
    %v1566 = vrot.slane %v1565, 2
    %v1567 = vadd.f32 %v1565, %v1566
    %v1568 = vrot.slane %v1567, 1
    %v1569 = vadd.f32 %v1567, %v1568
    %v1570 = vsel %vm1485, %v715, 0.0
    %v1571 = vsel %vm1486, %v716, 0.0
    %v1572 = vsel %vm1487, %v717, 0.0
    %v1573 = vsel %vm1488, %v718, 0.0
    %v1574 = vsel %vm1489, %v719, 0.0
    %v1575 = vsel %vm1490, %v720, 0.0
    %v1576 = vsel %vm1491, %v721, 0.0
    %v1577 = vsel %vm1492, %v722, 0.0
    %v1578 = vsel %vm1493, %v723, 0.0
    %v1579 = vsel %vm1494, %v724, 0.0
    %v1580 = vsel %vm1495, %v725, 0.0
    %v1581 = vsel %vm1496, %v726, 0.0
    %v1582 = vsel %vm1497, %v727, 0.0
    %v1583 = vsel %vm1498, %v728, 0.0
    %v1584 = vsel %vm1499, %v729, 0.0
    %v1585 = vsel %vm1500, %v730, 0.0
    %v1586 = vsel %vm1501, %v731, 0.0
    %v1587 = vsel %vm1502, %v732, 0.0
    %v1588 = vsel %vm1503, %v733, 0.0
    %v1589 = vsel %vm1504, %v734, 0.0
    %v1590 = vadd.f32 %v1570, %v1571
    %v1591 = vadd.f32 %v1590, %v1572
    %v1592 = vadd.f32 %v1591, %v1573
    %v1593 = vadd.f32 %v1592, %v1574
    %v1594 = vadd.f32 %v1593, %v1575
    %v1595 = vadd.f32 %v1594, %v1576
    %v1596 = vadd.f32 %v1595, %v1577
    %v1597 = vadd.f32 %v1596, %v1578
    %v1598 = vadd.f32 %v1597, %v1579
    %v1599 = vadd.f32 %v1598, %v1580
    %v1600 = vadd.f32 %v1599, %v1581
    %v1601 = vadd.f32 %v1600, %v1582
    %v1602 = vadd.f32 %v1601, %v1583
    %v1603 = vadd.f32 %v1602, %v1584
    %v1604 = vadd.f32 %v1603, %v1585
    %v1605 = vadd.f32 %v1604, %v1586
    %v1606 = vadd.f32 %v1605, %v1587
    %v1607 = vadd.f32 %v1606, %v1588
    %v1608 = vadd.f32 %v1607, %v1589
    %v1609 = vrot.slane %v1608, 4
    %v1610 = vadd.f32 %v1608, %v1609
    %v1611 = vrot.slane %v1610, 2
    %v1612 = vadd.f32 %v1610, %v1611
    %v1613 = vrot.slane %v1612, 1
    %v1614 = vadd.f32 %v1612, %v1613
    %v1615 = vld [vmem:[#allocation7 + $0x4] sm:$0x1]
    %v1616 = vadd.f32 %v1615, %v1569
    %1617 = vst [vmem:[#allocation7 + $0x4] sm:$0x1] %v1616
    %v1618 = vld [vmem:[#allocation8 + $0x4] sm:$0x1]
    %v1619 = vadd.f32 %v1618, %v1614
    %1620 = vst [vmem:[#allocation8 + $0x4] sm:$0x1] %v1619
    %vm1621 = vcmp.eq.s32.totalorder %v921, 5
    %vm1622 = vcmp.eq.s32.totalorder %v922, 5
    %vm1623 = vcmp.eq.s32.totalorder %v923, 5
    %vm1624 = vcmp.eq.s32.totalorder %v924, 5
    %vm1625 = vcmp.eq.s32.totalorder %v925, 5
    %vm1626 = vcmp.eq.s32.totalorder %v926, 5
    %vm1627 = vcmp.eq.s32.totalorder %v927, 5
    %vm1628 = vcmp.eq.s32.totalorder %v928, 5
    %vm1629 = vcmp.eq.s32.totalorder %v929, 5
    %vm1630 = vcmp.eq.s32.totalorder %v930, 5
    %vm1631 = vcmp.eq.s32.totalorder %v931, 5
    %vm1632 = vcmp.eq.s32.totalorder %v932, 5
    %vm1633 = vcmp.eq.s32.totalorder %v933, 5
    %vm1634 = vcmp.eq.s32.totalorder %v934, 5
    %vm1635 = vcmp.eq.s32.totalorder %v935, 5
    %vm1636 = vcmp.eq.s32.totalorder %v936, 5
    %vm1637 = vcmp.eq.s32.totalorder %v937, 5
    %vm1638 = vcmp.eq.s32.totalorder %v938, 5
    %vm1639 = vcmp.eq.s32.totalorder %v939, 5
    %vm1640 = vcmp.eq.s32.totalorder %v940, 5
    %v1641 = vsel %vm1621, 1, 0
    %v1642 = vsel %vm1622, 1, 0
    %v1643 = vsel %vm1623, 1, 0
    %v1644 = vsel %vm1624, 1, 0
    %v1645 = vsel %vm1625, 1, 0
    %v1646 = vsel %vm1626, 1, 0
    %v1647 = vsel %vm1627, 1, 0
    %v1648 = vsel %vm1628, 1, 0
    %v1649 = vsel %vm1629, 1, 0
    %v1650 = vsel %vm1630, 1, 0
    %v1651 = vsel %vm1631, 1, 0
    %v1652 = vsel %vm1632, 1, 0
    %v1653 = vsel %vm1633, 1, 0
    %v1654 = vsel %vm1634, 1, 0
    %v1655 = vsel %vm1635, 1, 0
    %v1656 = vsel %vm1636, 1, 0
    %v1657 = vsel %vm1637, 1, 0
    %v1658 = vsel %vm1638, 1, 0
    %v1659 = vsel %vm1639, 1, 0
    %v1660 = vsel %vm1640, 1, 0
    %v1661 = vcvt.s32.f32 %v1641
    %v1662 = vcvt.s32.f32 %v1642
    %v1663 = vcvt.s32.f32 %v1643
    %v1664 = vcvt.s32.f32 %v1644
    %v1665 = vcvt.s32.f32 %v1645
    %v1666 = vcvt.s32.f32 %v1646
    %v1667 = vcvt.s32.f32 %v1647
    %v1668 = vcvt.s32.f32 %v1648
    %v1669 = vcvt.s32.f32 %v1649
    %v1670 = vcvt.s32.f32 %v1650
    %v1671 = vcvt.s32.f32 %v1651
    %v1672 = vcvt.s32.f32 %v1652
    %v1673 = vcvt.s32.f32 %v1653
    %v1674 = vcvt.s32.f32 %v1654
    %v1675 = vcvt.s32.f32 %v1655
    %v1676 = vcvt.s32.f32 %v1656
    %v1677 = vcvt.s32.f32 %v1657
    %v1678 = vcvt.s32.f32 %v1658
    %v1679 = vcvt.s32.f32 %v1659
    %v1680 = vcvt.s32.f32 %v1660
    %v1681 = vadd.f32 %v1661, %v1662
    %v1682 = vadd.f32 %v1681, %v1663
    %v1683 = vadd.f32 %v1682, %v1664
    %v1684 = vadd.f32 %v1683, %v1665
    %v1685 = vadd.f32 %v1684, %v1666
    %v1686 = vadd.f32 %v1685, %v1667
    %v1687 = vadd.f32 %v1686, %v1668
    %v1688 = vadd.f32 %v1687, %v1669
    %v1689 = vadd.f32 %v1688, %v1670
    %v1690 = vadd.f32 %v1689, %v1671
    %v1691 = vadd.f32 %v1690, %v1672
    %v1692 = vadd.f32 %v1691, %v1673
    %v1693 = vadd.f32 %v1692, %v1674
    %v1694 = vadd.f32 %v1693, %v1675
    %v1695 = vadd.f32 %v1694, %v1676
    %v1696 = vadd.f32 %v1695, %v1677
    %v1697 = vadd.f32 %v1696, %v1678
    %v1698 = vadd.f32 %v1697, %v1679
    %v1699 = vadd.f32 %v1698, %v1680
    %v1700 = vrot.slane %v1699, 4
    %v1701 = vadd.f32 %v1699, %v1700
    %v1702 = vrot.slane %v1701, 2
    %v1703 = vadd.f32 %v1701, %v1702
    %v1704 = vrot.slane %v1703, 1
    %v1705 = vadd.f32 %v1703, %v1704
    %v1706 = vsel %vm1621, %v715, 0.0
    %v1707 = vsel %vm1622, %v716, 0.0
    %v1708 = vsel %vm1623, %v717, 0.0
    %v1709 = vsel %vm1624, %v718, 0.0
    %v1710 = vsel %vm1625, %v719, 0.0
    %v1711 = vsel %vm1626, %v720, 0.0
    %v1712 = vsel %vm1627, %v721, 0.0
    %v1713 = vsel %vm1628, %v722, 0.0
    %v1714 = vsel %vm1629, %v723, 0.0
    %v1715 = vsel %vm1630, %v724, 0.0
    %v1716 = vsel %vm1631, %v725, 0.0
    %v1717 = vsel %vm1632, %v726, 0.0
    %v1718 = vsel %vm1633, %v727, 0.0
    %v1719 = vsel %vm1634, %v728, 0.0
    %v1720 = vsel %vm1635, %v729, 0.0
    %v1721 = vsel %vm1636, %v730, 0.0
    %v1722 = vsel %vm1637, %v731, 0.0
    %v1723 = vsel %vm1638, %v732, 0.0
    %v1724 = vsel %vm1639, %v733, 0.0
    %v1725 = vsel %vm1640, %v734, 0.0
    %v1726 = vadd.f32 %v1706, %v1707
    %v1727 = vadd.f32 %v1726, %v1708
    %v1728 = vadd.f32 %v1727, %v1709
    %v1729 = vadd.f32 %v1728, %v1710
    %v1730 = vadd.f32 %v1729, %v1711
    %v1731 = vadd.f32 %v1730, %v1712
    %v1732 = vadd.f32 %v1731, %v1713
    %v1733 = vadd.f32 %v1732, %v1714
    %v1734 = vadd.f32 %v1733, %v1715
    %v1735 = vadd.f32 %v1734, %v1716
    %v1736 = vadd.f32 %v1735, %v1717
    %v1737 = vadd.f32 %v1736, %v1718
    %v1738 = vadd.f32 %v1737, %v1719
    %v1739 = vadd.f32 %v1738, %v1720
    %v1740 = vadd.f32 %v1739, %v1721
    %v1741 = vadd.f32 %v1740, %v1722
    %v1742 = vadd.f32 %v1741, %v1723
    %v1743 = vadd.f32 %v1742, %v1724
    %v1744 = vadd.f32 %v1743, %v1725
    %v1745 = vrot.slane %v1744, 4
    %v1746 = vadd.f32 %v1744, %v1745
    %v1747 = vrot.slane %v1746, 2
    %v1748 = vadd.f32 %v1746, %v1747
    %v1749 = vrot.slane %v1748, 1
    %v1750 = vadd.f32 %v1748, %v1749
    %v1751 = vld [vmem:[#allocation7 + $0x5] sm:$0x1]
    %v1752 = vadd.f32 %v1751, %v1705
    %1753 = vst [vmem:[#allocation7 + $0x5] sm:$0x1] %v1752
    %v1754 = vld [vmem:[#allocation8 + $0x5] sm:$0x1]
    %v1755 = vadd.f32 %v1754, %v1750
    %1756 = vst [vmem:[#allocation8 + $0x5] sm:$0x1] %v1755
    %vm1757 = vcmp.eq.s32.totalorder %v921, 6
    %vm1758 = vcmp.eq.s32.totalorder %v922, 6
    %vm1759 = vcmp.eq.s32.totalorder %v923, 6
    %vm1760 = vcmp.eq.s32.totalorder %v924, 6
    %vm1761 = vcmp.eq.s32.totalorder %v925, 6
    %vm1762 = vcmp.eq.s32.totalorder %v926, 6
    %vm1763 = vcmp.eq.s32.totalorder %v927, 6
    %vm1764 = vcmp.eq.s32.totalorder %v928, 6
    %vm1765 = vcmp.eq.s32.totalorder %v929, 6
    %vm1766 = vcmp.eq.s32.totalorder %v930, 6
    %vm1767 = vcmp.eq.s32.totalorder %v931, 6
    %vm1768 = vcmp.eq.s32.totalorder %v932, 6
    %vm1769 = vcmp.eq.s32.totalorder %v933, 6
    %vm1770 = vcmp.eq.s32.totalorder %v934, 6
    %vm1771 = vcmp.eq.s32.totalorder %v935, 6
    %vm1772 = vcmp.eq.s32.totalorder %v936, 6
    %vm1773 = vcmp.eq.s32.totalorder %v937, 6
    %vm1774 = vcmp.eq.s32.totalorder %v938, 6
    %vm1775 = vcmp.eq.s32.totalorder %v939, 6
    %vm1776 = vcmp.eq.s32.totalorder %v940, 6
    %v1777 = vsel %vm1757, 1, 0
    %v1778 = vsel %vm1758, 1, 0
    %v1779 = vsel %vm1759, 1, 0
    %v1780 = vsel %vm1760, 1, 0
    %v1781 = vsel %vm1761, 1, 0
    %v1782 = vsel %vm1762, 1, 0
    %v1783 = vsel %vm1763, 1, 0
    %v1784 = vsel %vm1764, 1, 0
    %v1785 = vsel %vm1765, 1, 0
    %v1786 = vsel %vm1766, 1, 0
    %v1787 = vsel %vm1767, 1, 0
    %v1788 = vsel %vm1768, 1, 0
    %v1789 = vsel %vm1769, 1, 0
    %v1790 = vsel %vm1770, 1, 0
    %v1791 = vsel %vm1771, 1, 0
    %v1792 = vsel %vm1772, 1, 0
    %v1793 = vsel %vm1773, 1, 0
    %v1794 = vsel %vm1774, 1, 0
    %v1795 = vsel %vm1775, 1, 0
    %v1796 = vsel %vm1776, 1, 0
    %v1797 = vcvt.s32.f32 %v1777
    %v1798 = vcvt.s32.f32 %v1778
    %v1799 = vcvt.s32.f32 %v1779
    %v1800 = vcvt.s32.f32 %v1780
    %v1801 = vcvt.s32.f32 %v1781
    %v1802 = vcvt.s32.f32 %v1782
    %v1803 = vcvt.s32.f32 %v1783
    %v1804 = vcvt.s32.f32 %v1784
    %v1805 = vcvt.s32.f32 %v1785
    %v1806 = vcvt.s32.f32 %v1786
    %v1807 = vcvt.s32.f32 %v1787
    %v1808 = vcvt.s32.f32 %v1788
    %v1809 = vcvt.s32.f32 %v1789
    %v1810 = vcvt.s32.f32 %v1790
    %v1811 = vcvt.s32.f32 %v1791
    %v1812 = vcvt.s32.f32 %v1792
    %v1813 = vcvt.s32.f32 %v1793
    %v1814 = vcvt.s32.f32 %v1794
    %v1815 = vcvt.s32.f32 %v1795
    %v1816 = vcvt.s32.f32 %v1796
    %v1817 = vadd.f32 %v1797, %v1798
    %v1818 = vadd.f32 %v1817, %v1799
    %v1819 = vadd.f32 %v1818, %v1800
    %v1820 = vadd.f32 %v1819, %v1801
    %v1821 = vadd.f32 %v1820, %v1802
    %v1822 = vadd.f32 %v1821, %v1803
    %v1823 = vadd.f32 %v1822, %v1804
    %v1824 = vadd.f32 %v1823, %v1805
    %v1825 = vadd.f32 %v1824, %v1806
    %v1826 = vadd.f32 %v1825, %v1807
    %v1827 = vadd.f32 %v1826, %v1808
    %v1828 = vadd.f32 %v1827, %v1809
    %v1829 = vadd.f32 %v1828, %v1810
    %v1830 = vadd.f32 %v1829, %v1811
    %v1831 = vadd.f32 %v1830, %v1812
    %v1832 = vadd.f32 %v1831, %v1813
    %v1833 = vadd.f32 %v1832, %v1814
    %v1834 = vadd.f32 %v1833, %v1815
    %v1835 = vadd.f32 %v1834, %v1816
    %v1836 = vrot.slane %v1835, 4
    %v1837 = vadd.f32 %v1835, %v1836
    %v1838 = vrot.slane %v1837, 2
    %v1839 = vadd.f32 %v1837, %v1838
    %v1840 = vrot.slane %v1839, 1
    %v1841 = vadd.f32 %v1839, %v1840
    %v1842 = vsel %vm1757, %v715, 0.0
    %v1843 = vsel %vm1758, %v716, 0.0
    %v1844 = vsel %vm1759, %v717, 0.0
    %v1845 = vsel %vm1760, %v718, 0.0
    %v1846 = vsel %vm1761, %v719, 0.0
    %v1847 = vsel %vm1762, %v720, 0.0
    %v1848 = vsel %vm1763, %v721, 0.0
    %v1849 = vsel %vm1764, %v722, 0.0
    %v1850 = vsel %vm1765, %v723, 0.0
    %v1851 = vsel %vm1766, %v724, 0.0
    %v1852 = vsel %vm1767, %v725, 0.0
    %v1853 = vsel %vm1768, %v726, 0.0
    %v1854 = vsel %vm1769, %v727, 0.0
    %v1855 = vsel %vm1770, %v728, 0.0
    %v1856 = vsel %vm1771, %v729, 0.0
    %v1857 = vsel %vm1772, %v730, 0.0
    %v1858 = vsel %vm1773, %v731, 0.0
    %v1859 = vsel %vm1774, %v732, 0.0
    %v1860 = vsel %vm1775, %v733, 0.0
    %v1861 = vsel %vm1776, %v734, 0.0
    %v1862 = vadd.f32 %v1842, %v1843
    %v1863 = vadd.f32 %v1862, %v1844
    %v1864 = vadd.f32 %v1863, %v1845
    %v1865 = vadd.f32 %v1864, %v1846
    %v1866 = vadd.f32 %v1865, %v1847
    %v1867 = vadd.f32 %v1866, %v1848
    %v1868 = vadd.f32 %v1867, %v1849
    %v1869 = vadd.f32 %v1868, %v1850
    %v1870 = vadd.f32 %v1869, %v1851
    %v1871 = vadd.f32 %v1870, %v1852
    %v1872 = vadd.f32 %v1871, %v1853
    %v1873 = vadd.f32 %v1872, %v1854
    %v1874 = vadd.f32 %v1873, %v1855
    %v1875 = vadd.f32 %v1874, %v1856
    %v1876 = vadd.f32 %v1875, %v1857
    %v1877 = vadd.f32 %v1876, %v1858
    %v1878 = vadd.f32 %v1877, %v1859
    %v1879 = vadd.f32 %v1878, %v1860
    %v1880 = vadd.f32 %v1879, %v1861
    %v1881 = vrot.slane %v1880, 4
    %v1882 = vadd.f32 %v1880, %v1881
    %v1883 = vrot.slane %v1882, 2
    %v1884 = vadd.f32 %v1882, %v1883
    %v1885 = vrot.slane %v1884, 1
    %v1886 = vadd.f32 %v1884, %v1885
    %v1887 = vld [vmem:[#allocation7 + $0x6] sm:$0x1]
    %v1888 = vadd.f32 %v1887, %v1841
    %1889 = vst [vmem:[#allocation7 + $0x6] sm:$0x1] %v1888
    %v1890 = vld [vmem:[#allocation8 + $0x6] sm:$0x1]
    %v1891 = vadd.f32 %v1890, %v1886
    %1892 = vst [vmem:[#allocation8 + $0x6] sm:$0x1] %v1891
    %vm1893 = vcmp.eq.s32.totalorder %v921, 7
    %vm1894 = vcmp.eq.s32.totalorder %v922, 7
    %vm1895 = vcmp.eq.s32.totalorder %v923, 7
    %vm1896 = vcmp.eq.s32.totalorder %v924, 7
    %vm1897 = vcmp.eq.s32.totalorder %v925, 7
    %vm1898 = vcmp.eq.s32.totalorder %v926, 7
    %vm1899 = vcmp.eq.s32.totalorder %v927, 7
    %vm1900 = vcmp.eq.s32.totalorder %v928, 7
    %vm1901 = vcmp.eq.s32.totalorder %v929, 7
    %vm1902 = vcmp.eq.s32.totalorder %v930, 7
    %vm1903 = vcmp.eq.s32.totalorder %v931, 7
    %vm1904 = vcmp.eq.s32.totalorder %v932, 7
    %vm1905 = vcmp.eq.s32.totalorder %v933, 7
    %vm1906 = vcmp.eq.s32.totalorder %v934, 7
    %vm1907 = vcmp.eq.s32.totalorder %v935, 7
    %vm1908 = vcmp.eq.s32.totalorder %v936, 7
    %vm1909 = vcmp.eq.s32.totalorder %v937, 7
    %vm1910 = vcmp.eq.s32.totalorder %v938, 7
    %vm1911 = vcmp.eq.s32.totalorder %v939, 7
    %vm1912 = vcmp.eq.s32.totalorder %v940, 7
    %v1913 = vsel %vm1893, 1, 0
    %v1914 = vsel %vm1894, 1, 0
    %v1915 = vsel %vm1895, 1, 0
    %v1916 = vsel %vm1896, 1, 0
    %v1917 = vsel %vm1897, 1, 0
    %v1918 = vsel %vm1898, 1, 0
    %v1919 = vsel %vm1899, 1, 0
    %v1920 = vsel %vm1900, 1, 0
    %v1921 = vsel %vm1901, 1, 0
    %v1922 = vsel %vm1902, 1, 0
    %v1923 = vsel %vm1903, 1, 0
    %v1924 = vsel %vm1904, 1, 0
    %v1925 = vsel %vm1905, 1, 0
    %v1926 = vsel %vm1906, 1, 0
    %v1927 = vsel %vm1907, 1, 0
    %v1928 = vsel %vm1908, 1, 0
    %v1929 = vsel %vm1909, 1, 0
    %v1930 = vsel %vm1910, 1, 0
    %v1931 = vsel %vm1911, 1, 0
    %v1932 = vsel %vm1912, 1, 0
    %v1933 = vcvt.s32.f32 %v1913
    %v1934 = vcvt.s32.f32 %v1914
    %v1935 = vcvt.s32.f32 %v1915
    %v1936 = vcvt.s32.f32 %v1916
    %v1937 = vcvt.s32.f32 %v1917
    %v1938 = vcvt.s32.f32 %v1918
    %v1939 = vcvt.s32.f32 %v1919
    %v1940 = vcvt.s32.f32 %v1920
    %v1941 = vcvt.s32.f32 %v1921
    %v1942 = vcvt.s32.f32 %v1922
    %v1943 = vcvt.s32.f32 %v1923
    %v1944 = vcvt.s32.f32 %v1924
    %v1945 = vcvt.s32.f32 %v1925
    %v1946 = vcvt.s32.f32 %v1926
    %v1947 = vcvt.s32.f32 %v1927
    %v1948 = vcvt.s32.f32 %v1928
    %v1949 = vcvt.s32.f32 %v1929
    %v1950 = vcvt.s32.f32 %v1930
    %v1951 = vcvt.s32.f32 %v1931
    %v1952 = vcvt.s32.f32 %v1932
    %v1953 = vadd.f32 %v1933, %v1934
    %v1954 = vadd.f32 %v1953, %v1935
    %v1955 = vadd.f32 %v1954, %v1936
    %v1956 = vadd.f32 %v1955, %v1937
    %v1957 = vadd.f32 %v1956, %v1938
    %v1958 = vadd.f32 %v1957, %v1939
    %v1959 = vadd.f32 %v1958, %v1940
    %v1960 = vadd.f32 %v1959, %v1941
    %v1961 = vadd.f32 %v1960, %v1942
    %v1962 = vadd.f32 %v1961, %v1943
    %v1963 = vadd.f32 %v1962, %v1944
    %v1964 = vadd.f32 %v1963, %v1945
    %v1965 = vadd.f32 %v1964, %v1946
    %v1966 = vadd.f32 %v1965, %v1947
    %v1967 = vadd.f32 %v1966, %v1948
    %v1968 = vadd.f32 %v1967, %v1949
    %v1969 = vadd.f32 %v1968, %v1950
    %v1970 = vadd.f32 %v1969, %v1951
    %v1971 = vadd.f32 %v1970, %v1952
    %v1972 = vrot.slane %v1971, 4
    %v1973 = vadd.f32 %v1971, %v1972
    %v1974 = vrot.slane %v1973, 2
    %v1975 = vadd.f32 %v1973, %v1974
    %v1976 = vrot.slane %v1975, 1
    %v1977 = vadd.f32 %v1975, %v1976
    %v1978 = vsel %vm1893, %v715, 0.0
    %v1979 = vsel %vm1894, %v716, 0.0
    %v1980 = vsel %vm1895, %v717, 0.0
    %v1981 = vsel %vm1896, %v718, 0.0
    %v1982 = vsel %vm1897, %v719, 0.0
    %v1983 = vsel %vm1898, %v720, 0.0
    %v1984 = vsel %vm1899, %v721, 0.0
    %v1985 = vsel %vm1900, %v722, 0.0
    %v1986 = vsel %vm1901, %v723, 0.0
    %v1987 = vsel %vm1902, %v724, 0.0
    %v1988 = vsel %vm1903, %v725, 0.0
    %v1989 = vsel %vm1904, %v726, 0.0
    %v1990 = vsel %vm1905, %v727, 0.0
    %v1991 = vsel %vm1906, %v728, 0.0
    %v1992 = vsel %vm1907, %v729, 0.0
    %v1993 = vsel %vm1908, %v730, 0.0
    %v1994 = vsel %vm1909, %v731, 0.0
    %v1995 = vsel %vm1910, %v732, 0.0
    %v1996 = vsel %vm1911, %v733, 0.0
    %v1997 = vsel %vm1912, %v734, 0.0
    %v1998 = vadd.f32 %v1978, %v1979
    %v1999 = vadd.f32 %v1998, %v1980
    %v2000 = vadd.f32 %v1999, %v1981
    %v2001 = vadd.f32 %v2000, %v1982
    %v2002 = vadd.f32 %v2001, %v1983
    %v2003 = vadd.f32 %v2002, %v1984
    %v2004 = vadd.f32 %v2003, %v1985
    %v2005 = vadd.f32 %v2004, %v1986
    %v2006 = vadd.f32 %v2005, %v1987
    %v2007 = vadd.f32 %v2006, %v1988
    %v2008 = vadd.f32 %v2007, %v1989
    %v2009 = vadd.f32 %v2008, %v1990
    %v2010 = vadd.f32 %v2009, %v1991
    %v2011 = vadd.f32 %v2010, %v1992
    %v2012 = vadd.f32 %v2011, %v1993
    %v2013 = vadd.f32 %v2012, %v1994
    %v2014 = vadd.f32 %v2013, %v1995
    %v2015 = vadd.f32 %v2014, %v1996
    %v2016 = vadd.f32 %v2015, %v1997
    %v2017 = vrot.slane %v2016, 4
    %v2018 = vadd.f32 %v2016, %v2017
    %v2019 = vrot.slane %v2018, 2
    %v2020 = vadd.f32 %v2018, %v2019
    %v2021 = vrot.slane %v2020, 1
    %v2022 = vadd.f32 %v2020, %v2021
    %v2023 = vld [vmem:[#allocation7 + $0x7] sm:$0x1]
    %v2024 = vadd.f32 %v2023, %v1977
    %2025 = vst [vmem:[#allocation7 + $0x7] sm:$0x1] %v2024
    %v2026 = vld [vmem:[#allocation8 + $0x7] sm:$0x1]
    %v2027 = vadd.f32 %v2026, %v2022
    %2028 = vst [vmem:[#allocation8 + $0x7] sm:$0x1] %v2027
    %vm2029 = vcmp.eq.s32.totalorder %v921, 8
    %vm2030 = vcmp.eq.s32.totalorder %v922, 8
    %vm2031 = vcmp.eq.s32.totalorder %v923, 8
    %vm2032 = vcmp.eq.s32.totalorder %v924, 8
    %vm2033 = vcmp.eq.s32.totalorder %v925, 8
    %vm2034 = vcmp.eq.s32.totalorder %v926, 8
    %vm2035 = vcmp.eq.s32.totalorder %v927, 8
    %vm2036 = vcmp.eq.s32.totalorder %v928, 8
    %vm2037 = vcmp.eq.s32.totalorder %v929, 8
    %vm2038 = vcmp.eq.s32.totalorder %v930, 8
    %vm2039 = vcmp.eq.s32.totalorder %v931, 8
    %vm2040 = vcmp.eq.s32.totalorder %v932, 8
    %vm2041 = vcmp.eq.s32.totalorder %v933, 8
    %vm2042 = vcmp.eq.s32.totalorder %v934, 8
    %vm2043 = vcmp.eq.s32.totalorder %v935, 8
    %vm2044 = vcmp.eq.s32.totalorder %v936, 8
    %vm2045 = vcmp.eq.s32.totalorder %v937, 8
    %vm2046 = vcmp.eq.s32.totalorder %v938, 8
    %vm2047 = vcmp.eq.s32.totalorder %v939, 8
    %vm2048 = vcmp.eq.s32.totalorder %v940, 8
    %v2049 = vsel %vm2029, 1, 0
    %v2050 = vsel %vm2030, 1, 0
    %v2051 = vsel %vm2031, 1, 0
    %v2052 = vsel %vm2032, 1, 0
    %v2053 = vsel %vm2033, 1, 0
    %v2054 = vsel %vm2034, 1, 0
    %v2055 = vsel %vm2035, 1, 0
    %v2056 = vsel %vm2036, 1, 0
    %v2057 = vsel %vm2037, 1, 0
    %v2058 = vsel %vm2038, 1, 0
    %v2059 = vsel %vm2039, 1, 0
    %v2060 = vsel %vm2040, 1, 0
    %v2061 = vsel %vm2041, 1, 0
    %v2062 = vsel %vm2042, 1, 0
    %v2063 = vsel %vm2043, 1, 0
    %v2064 = vsel %vm2044, 1, 0
    %v2065 = vsel %vm2045, 1, 0
    %v2066 = vsel %vm2046, 1, 0
    %v2067 = vsel %vm2047, 1, 0
    %v2068 = vsel %vm2048, 1, 0
    %v2069 = vcvt.s32.f32 %v2049
    %v2070 = vcvt.s32.f32 %v2050
    %v2071 = vcvt.s32.f32 %v2051
    %v2072 = vcvt.s32.f32 %v2052
    %v2073 = vcvt.s32.f32 %v2053
    %v2074 = vcvt.s32.f32 %v2054
    %v2075 = vcvt.s32.f32 %v2055
    %v2076 = vcvt.s32.f32 %v2056
    %v2077 = vcvt.s32.f32 %v2057
    %v2078 = vcvt.s32.f32 %v2058
    %v2079 = vcvt.s32.f32 %v2059
    %v2080 = vcvt.s32.f32 %v2060
    %v2081 = vcvt.s32.f32 %v2061
    %v2082 = vcvt.s32.f32 %v2062
    %v2083 = vcvt.s32.f32 %v2063
    %v2084 = vcvt.s32.f32 %v2064
    %v2085 = vcvt.s32.f32 %v2065
    %v2086 = vcvt.s32.f32 %v2066
    %v2087 = vcvt.s32.f32 %v2067
    %v2088 = vcvt.s32.f32 %v2068
    %v2089 = vadd.f32 %v2069, %v2070
    %v2090 = vadd.f32 %v2089, %v2071
    %v2091 = vadd.f32 %v2090, %v2072
    %v2092 = vadd.f32 %v2091, %v2073
    %v2093 = vadd.f32 %v2092, %v2074
    %v2094 = vadd.f32 %v2093, %v2075
    %v2095 = vadd.f32 %v2094, %v2076
    %v2096 = vadd.f32 %v2095, %v2077
    %v2097 = vadd.f32 %v2096, %v2078
    %v2098 = vadd.f32 %v2097, %v2079
    %v2099 = vadd.f32 %v2098, %v2080
    %v2100 = vadd.f32 %v2099, %v2081
    %v2101 = vadd.f32 %v2100, %v2082
    %v2102 = vadd.f32 %v2101, %v2083
    %v2103 = vadd.f32 %v2102, %v2084
    %v2104 = vadd.f32 %v2103, %v2085
    %v2105 = vadd.f32 %v2104, %v2086
    %v2106 = vadd.f32 %v2105, %v2087
    %v2107 = vadd.f32 %v2106, %v2088
    %v2108 = vrot.slane %v2107, 4
    %v2109 = vadd.f32 %v2107, %v2108
    %v2110 = vrot.slane %v2109, 2
    %v2111 = vadd.f32 %v2109, %v2110
    %v2112 = vrot.slane %v2111, 1
    %v2113 = vadd.f32 %v2111, %v2112
    %v2114 = vsel %vm2029, %v715, 0.0
    %v2115 = vsel %vm2030, %v716, 0.0
    %v2116 = vsel %vm2031, %v717, 0.0
    %v2117 = vsel %vm2032, %v718, 0.0
    %v2118 = vsel %vm2033, %v719, 0.0
    %v2119 = vsel %vm2034, %v720, 0.0
    %v2120 = vsel %vm2035, %v721, 0.0
    %v2121 = vsel %vm2036, %v722, 0.0
    %v2122 = vsel %vm2037, %v723, 0.0
    %v2123 = vsel %vm2038, %v724, 0.0
    %v2124 = vsel %vm2039, %v725, 0.0
    %v2125 = vsel %vm2040, %v726, 0.0
    %v2126 = vsel %vm2041, %v727, 0.0
    %v2127 = vsel %vm2042, %v728, 0.0
    %v2128 = vsel %vm2043, %v729, 0.0
    %v2129 = vsel %vm2044, %v730, 0.0
    %v2130 = vsel %vm2045, %v731, 0.0
    %v2131 = vsel %vm2046, %v732, 0.0
    %v2132 = vsel %vm2047, %v733, 0.0
    %v2133 = vsel %vm2048, %v734, 0.0
    %v2134 = vadd.f32 %v2114, %v2115
    %v2135 = vadd.f32 %v2134, %v2116
    %v2136 = vadd.f32 %v2135, %v2117
    %v2137 = vadd.f32 %v2136, %v2118
    %v2138 = vadd.f32 %v2137, %v2119
    %v2139 = vadd.f32 %v2138, %v2120
    %v2140 = vadd.f32 %v2139, %v2121
    %v2141 = vadd.f32 %v2140, %v2122
    %v2142 = vadd.f32 %v2141, %v2123
    %v2143 = vadd.f32 %v2142, %v2124
    %v2144 = vadd.f32 %v2143, %v2125
    %v2145 = vadd.f32 %v2144, %v2126
    %v2146 = vadd.f32 %v2145, %v2127
    %v2147 = vadd.f32 %v2146, %v2128
    %v2148 = vadd.f32 %v2147, %v2129
    %v2149 = vadd.f32 %v2148, %v2130
    %v2150 = vadd.f32 %v2149, %v2131
    %v2151 = vadd.f32 %v2150, %v2132
    %v2152 = vadd.f32 %v2151, %v2133
    %v2153 = vrot.slane %v2152, 4
    %v2154 = vadd.f32 %v2152, %v2153
    %v2155 = vrot.slane %v2154, 2
    %v2156 = vadd.f32 %v2154, %v2155
    %v2157 = vrot.slane %v2156, 1
    %v2158 = vadd.f32 %v2156, %v2157
    %v2159 = vld [vmem:[#allocation7 + $0x8] sm:$0x1]
    %v2160 = vadd.f32 %v2159, %v2113
    %2161 = vst [vmem:[#allocation7 + $0x8] sm:$0x1] %v2160
    %v2162 = vld [vmem:[#allocation8 + $0x8] sm:$0x1]
    %v2163 = vadd.f32 %v2162, %v2158
    %2164 = vst [vmem:[#allocation8 + $0x8] sm:$0x1] %v2163
    %vm2165 = vcmp.eq.s32.totalorder %v921, 9
    %vm2166 = vcmp.eq.s32.totalorder %v922, 9
    %vm2167 = vcmp.eq.s32.totalorder %v923, 9
    %vm2168 = vcmp.eq.s32.totalorder %v924, 9
    %vm2169 = vcmp.eq.s32.totalorder %v925, 9
    %vm2170 = vcmp.eq.s32.totalorder %v926, 9
    %vm2171 = vcmp.eq.s32.totalorder %v927, 9
    %vm2172 = vcmp.eq.s32.totalorder %v928, 9
    %vm2173 = vcmp.eq.s32.totalorder %v929, 9
    %vm2174 = vcmp.eq.s32.totalorder %v930, 9
    %vm2175 = vcmp.eq.s32.totalorder %v931, 9
    %vm2176 = vcmp.eq.s32.totalorder %v932, 9
    %vm2177 = vcmp.eq.s32.totalorder %v933, 9
    %vm2178 = vcmp.eq.s32.totalorder %v934, 9
    %vm2179 = vcmp.eq.s32.totalorder %v935, 9
    %vm2180 = vcmp.eq.s32.totalorder %v936, 9
    %vm2181 = vcmp.eq.s32.totalorder %v937, 9
    %vm2182 = vcmp.eq.s32.totalorder %v938, 9
    %vm2183 = vcmp.eq.s32.totalorder %v939, 9
    %vm2184 = vcmp.eq.s32.totalorder %v940, 9
    %v2185 = vsel %vm2165, 1, 0
    %v2186 = vsel %vm2166, 1, 0
    %v2187 = vsel %vm2167, 1, 0
    %v2188 = vsel %vm2168, 1, 0
    %v2189 = vsel %vm2169, 1, 0
    %v2190 = vsel %vm2170, 1, 0
    %v2191 = vsel %vm2171, 1, 0
    %v2192 = vsel %vm2172, 1, 0
    %v2193 = vsel %vm2173, 1, 0
    %v2194 = vsel %vm2174, 1, 0
    %v2195 = vsel %vm2175, 1, 0
    %v2196 = vsel %vm2176, 1, 0
    %v2197 = vsel %vm2177, 1, 0
    %v2198 = vsel %vm2178, 1, 0
    %v2199 = vsel %vm2179, 1, 0
    %v2200 = vsel %vm2180, 1, 0
    %v2201 = vsel %vm2181, 1, 0
    %v2202 = vsel %vm2182, 1, 0
    %v2203 = vsel %vm2183, 1, 0
    %v2204 = vsel %vm2184, 1, 0
    %v2205 = vcvt.s32.f32 %v2185
    %v2206 = vcvt.s32.f32 %v2186
    %v2207 = vcvt.s32.f32 %v2187
    %v2208 = vcvt.s32.f32 %v2188
    %v2209 = vcvt.s32.f32 %v2189
    %v2210 = vcvt.s32.f32 %v2190
    %v2211 = vcvt.s32.f32 %v2191
    %v2212 = vcvt.s32.f32 %v2192
    %v2213 = vcvt.s32.f32 %v2193
    %v2214 = vcvt.s32.f32 %v2194
    %v2215 = vcvt.s32.f32 %v2195
    %v2216 = vcvt.s32.f32 %v2196
    %v2217 = vcvt.s32.f32 %v2197
    %v2218 = vcvt.s32.f32 %v2198
    %v2219 = vcvt.s32.f32 %v2199
    %v2220 = vcvt.s32.f32 %v2200
    %v2221 = vcvt.s32.f32 %v2201
    %v2222 = vcvt.s32.f32 %v2202
    %v2223 = vcvt.s32.f32 %v2203
    %v2224 = vcvt.s32.f32 %v2204
    %v2225 = vadd.f32 %v2205, %v2206
    %v2226 = vadd.f32 %v2225, %v2207
    %v2227 = vadd.f32 %v2226, %v2208
    %v2228 = vadd.f32 %v2227, %v2209
    %v2229 = vadd.f32 %v2228, %v2210
    %v2230 = vadd.f32 %v2229, %v2211
    %v2231 = vadd.f32 %v2230, %v2212
    %v2232 = vadd.f32 %v2231, %v2213
    %v2233 = vadd.f32 %v2232, %v2214
    %v2234 = vadd.f32 %v2233, %v2215
    %v2235 = vadd.f32 %v2234, %v2216
    %v2236 = vadd.f32 %v2235, %v2217
    %v2237 = vadd.f32 %v2236, %v2218
    %v2238 = vadd.f32 %v2237, %v2219
    %v2239 = vadd.f32 %v2238, %v2220
    %v2240 = vadd.f32 %v2239, %v2221
    %v2241 = vadd.f32 %v2240, %v2222
    %v2242 = vadd.f32 %v2241, %v2223
    %v2243 = vadd.f32 %v2242, %v2224
    %v2244 = vrot.slane %v2243, 4
    %v2245 = vadd.f32 %v2243, %v2244
    %v2246 = vrot.slane %v2245, 2
    %v2247 = vadd.f32 %v2245, %v2246
    %v2248 = vrot.slane %v2247, 1
    %v2249 = vadd.f32 %v2247, %v2248
    %v2250 = vsel %vm2165, %v715, 0.0
    %v2251 = vsel %vm2166, %v716, 0.0
    %v2252 = vsel %vm2167, %v717, 0.0
    %v2253 = vsel %vm2168, %v718, 0.0
    %v2254 = vsel %vm2169, %v719, 0.0
    %v2255 = vsel %vm2170, %v720, 0.0
    %v2256 = vsel %vm2171, %v721, 0.0
    %v2257 = vsel %vm2172, %v722, 0.0
    %v2258 = vsel %vm2173, %v723, 0.0
    %v2259 = vsel %vm2174, %v724, 0.0
    %v2260 = vsel %vm2175, %v725, 0.0
    %v2261 = vsel %vm2176, %v726, 0.0
    %v2262 = vsel %vm2177, %v727, 0.0
    %v2263 = vsel %vm2178, %v728, 0.0
    %v2264 = vsel %vm2179, %v729, 0.0
    %v2265 = vsel %vm2180, %v730, 0.0
    %v2266 = vsel %vm2181, %v731, 0.0
    %v2267 = vsel %vm2182, %v732, 0.0
    %v2268 = vsel %vm2183, %v733, 0.0
    %v2269 = vsel %vm2184, %v734, 0.0
    %v2270 = vadd.f32 %v2250, %v2251
    %v2271 = vadd.f32 %v2270, %v2252
    %v2272 = vadd.f32 %v2271, %v2253
    %v2273 = vadd.f32 %v2272, %v2254
    %v2274 = vadd.f32 %v2273, %v2255
    %v2275 = vadd.f32 %v2274, %v2256
    %v2276 = vadd.f32 %v2275, %v2257
    %v2277 = vadd.f32 %v2276, %v2258
    %v2278 = vadd.f32 %v2277, %v2259
    %v2279 = vadd.f32 %v2278, %v2260
    %v2280 = vadd.f32 %v2279, %v2261
    %v2281 = vadd.f32 %v2280, %v2262
    %v2282 = vadd.f32 %v2281, %v2263
    %v2283 = vadd.f32 %v2282, %v2264
    %v2284 = vadd.f32 %v2283, %v2265
    %v2285 = vadd.f32 %v2284, %v2266
    %v2286 = vadd.f32 %v2285, %v2267
    %v2287 = vadd.f32 %v2286, %v2268
    %v2288 = vadd.f32 %v2287, %v2269
    %v2289 = vrot.slane %v2288, 4
    %v2290 = vadd.f32 %v2288, %v2289
    %v2291 = vrot.slane %v2290, 2
    %v2292 = vadd.f32 %v2290, %v2291
    %v2293 = vrot.slane %v2292, 1
    %v2294 = vadd.f32 %v2292, %v2293
    %v2295 = vld [vmem:[#allocation7 + $0x9] sm:$0x1]
    %v2296 = vadd.f32 %v2295, %v2249
    %2297 = vst [vmem:[#allocation7 + $0x9] sm:$0x1] %v2296
    %v2298 = vld [vmem:[#allocation8 + $0x9] sm:$0x1]
    %v2299 = vadd.f32 %v2298, %v2294
    %2300 = vst [vmem:[#allocation8 + $0x9] sm:$0x1] %v2299
    // Predicated region
    $region22: #{tpu_custom_call.1} parent=1 // pred_check
      _
    $region23: #{tpu_custom_call.1} parent=1 // pred_check_branch
      %2302 = sbr.rel (0) target = $region25
    $region24: #{tpu_custom_call.1} parent=1 // pred_region
      %2304 = vsyncadd [#allocation4], 0
      %s2305 = sshll.u32 [#allocation7], 4
      %s2306 = int_to_ptr.vmem [resolvable:$true] %s2305
      %s2307 = sshll.u32 %s2, 4
      %s2308 = int_to_ptr.hbm [resolvable:$true] %s2307
      %2313 = dma.vmem_to_hbm [thread:$0]  %s2306, 256, %s2308, [#allocation4], 128, 128, 8
    $region25: #{tpu_custom_call.1} parent=1 // pred_fallthru
      _
    // Predicated region
    $region26: #{tpu_custom_call.1} parent=1 // pred_check
      _
    $region27: #{tpu_custom_call.1} parent=1 // pred_check_branch
      %2315 = sbr.rel (0) target = $region29
    $region28: #{tpu_custom_call.1} parent=1 // pred_region
      %2317 = vsyncadd [#allocation9], 0
      %s2318 = sshll.u32 [#allocation8], 4
      %s2319 = int_to_ptr.vmem [resolvable:$true] %s2318
      %s2320 = sshll.u32 %s3, 4
      %s2321 = int_to_ptr.hbm [resolvable:$true] %s2320
      %2326 = dma.vmem_to_hbm [thread:$0]  %s2319, 256, %s2321, [#allocation9], 128, 128, 8
    $region29: #{tpu_custom_call.1} parent=1 // pred_fallthru
      _
    // Predicated region
    $region30: #{tpu_custom_call.1} parent=1 // pred_check
      _
    $region31: #{tpu_custom_call.1} parent=1 // pred_check_branch
      %2328 = sbr.rel (0) target = $region33
    $region32: #{tpu_custom_call.1} parent=1 // pred_region
      %2330 = dma.done [#allocation4], 256
    $region33: #{tpu_custom_call.1} parent=1 // pred_fallthru
      _
    // Predicated region
    $region34: #{tpu_custom_call.1} parent=1 // pred_check
      _
    $region35: #{tpu_custom_call.1} parent=1 // pred_check_branch
      %2332 = sbr.rel (0) target = $region37
    $region36: #{tpu_custom_call.1} parent=1 // pred_region
      %2334 = dma.done [#allocation9], 256
    $region37: #{tpu_custom_call.1} parent=1 // pred_fallthru
      _
    %2335 = vsyncpa [#allocation3], 1
    %2336 = vsyncpa [#allocation6], 1
    %2337 = vsyncpa [#allocation4], 1
    %2338 = vsyncpa [#allocation9], 1

</llo_original>
